<compile_context>
chip_gen: v7x
topology: tpu7x:2x2x1
jax: 0.10.0
libtpu: 0.0.40
codegen_flags: <defaults>
</compile_context>

<pallas_src>
import jax
import jax.numpy as jnp
from jax.experimental import pallas as pl
from jax.experimental.pallas import tpu as pltpu

NEG_SLOPE = 0.01  # torch.nn.LeakyReLU default


def _leaky_relu(z):
    return jnp.where(z >= 0, z, NEG_SLOPE * z)


def kgat_kernel(a_ref, xs_ref, xd_ref, w_ref, b_ref, o_ref, acc_ref):
    """Grid = (row blocks, K blocks).  acc_ref holds the f32 partial h_n for this row block."""
    k = pl.program_id(1)

    @pl.when(k == 0)
    def _():
        acc_ref[...] = jnp.zeros_like(acc_ref)

    # Message passing partial sum: h_n[dst] += sum_{src in K-block} A[dst, src] * X[src]
    acc_ref[...] += jnp.dot(a_ref[...], xs_ref[...], preferred_element_type=jnp.float32)

    @pl.when(k == pl.num_programs(1) - 1)
    def _():
        h_n = acc_ref[...]                                    # [tile_m, D] f32
        emb = xd_ref[...].astype(jnp.float32)                 # dst-node embeddings
        # Bi-interaction, fused: [X + h_n | X * h_n] @ blockdiag(W1, W2) + [b1 | b2]
        feat = jnp.concatenate([emb + h_n, emb * h_n], axis=-1).astype(jnp.bfloat16)
        z = jnp.dot(feat, w_ref[...], preferred_element_type=jnp.float32) + b_ref[...]
        od = z.shape[-1] // 2
        o_ref[...] = (_leaky_relu(z[:, :od]) + _leaky_relu(z[:, od:])).astype(o_ref.dtype)


def kgat_layer_forward(adj, x, w1, b1, w2, b2, *, tile_m=256, tile_k=512):
    """adj: [N, N] f32, x: [N, D] f32, w1/w2: [D, O] f32 (pre-transposed), b1/b2: [1, O] f32.

    Returns [N, O] f32 = LeakyReLU((x + adj@x) @ w1 + b1) + LeakyReLU((x * adj@x) @ w2 + b2).
    """
    N, D = x.shape
    O = w1.shape[1]
    tile_m = min(tile_m, N)
    tile_k = min(tile_k, N)
    assert N % tile_m == 0 and N % tile_k == 0
    assert tile_m % 8 == 0 and (tile_k % 128 == 0 or tile_k == N)

    # bf16 streaming operands -> half the HBM traffic on the dominant [N, N] matrix;
    # all dots keep f32 accumulation.
    adj_bf = adj.astype(jnp.bfloat16)
    x_bf = x.astype(jnp.bfloat16)

    # Fuse the two small projections into one block-diagonal matmul.
    w_cat = jnp.zeros((2 * D, 2 * O), jnp.float32)
    w_cat = w_cat.at[:D, :O].set(w1).at[D:, O:].set(w2).astype(jnp.bfloat16)
    b_cat = jnp.concatenate([b1, b2], axis=-1).astype(jnp.float32)

    grid = (N // tile_m, N // tile_k)

    cost = pl.CostEstimate(
        flops=2 * N * N * D + 2 * N * (2 * D) * (2 * O),
        transcendentals=0,
        bytes_accessed=(N * N * 2) + (2 * N * D * 2) + (2 * D * 2 * O * 2)
        + (2 * O * 4) + (N * O * 4),
    )

    return pl.pallas_call(
        kgat_kernel,
        out_shape=jax.ShapeDtypeStruct((N, O), jnp.float32),
        grid_spec=pltpu.PrefetchScalarGridSpec(
            num_scalar_prefetch=0,
            grid=grid,
            in_specs=[
                pl.BlockSpec((tile_m, tile_k), lambda i, k: (i, k)),  # A block (dst rows x src K-block)
                pl.BlockSpec((tile_k, D), lambda i, k: (k, 0)),       # X source rows (K-block)
                pl.BlockSpec((tile_m, D), lambda i, k: (i, 0)),       # X dst rows (constant over k)
                pl.BlockSpec((2 * D, 2 * O), lambda i, k: (0, 0)),    # blockdiag(W1, W2)
                pl.BlockSpec((1, 2 * O), lambda i, k: (0, 0)),        # [b1 | b2]
            ],
            out_specs=pl.BlockSpec((tile_m, O), lambda i, k: (i, 0)),
            scratch_shapes=[pltpu.VMEM((tile_m, D), jnp.float32)],    # h_n accumulator
        ),
        compiler_params=pltpu.CompilerParams(
            dimension_semantics=("parallel", "arbitrary"),
            vmem_limit_bytes=32 * 1024 * 1024,
        ),
        cost_estimate=cost,
    )(adj_bf, x_bf, x_bf, w_cat, b_cat)


def _reference(adj, x, w1, b1, w2, b2):
    """Pure-JAX reference with the same bf16-input / f32-accumulate numerics as the kernel."""
    adj_bf = adj.astype(jnp.bfloat16)
    x_bf = x.astype(jnp.bfloat16)
    h_n = jnp.dot(adj_bf, x_bf, preferred_element_type=jnp.float32)
    emb = x_bf.astype(jnp.float32)
    add = (emb + h_n).astype(jnp.bfloat16)
    mul = (emb * h_n).astype(jnp.bfloat16)
    z1 = jnp.dot(add, w1.astype(jnp.bfloat16), preferred_element_type=jnp.float32) + b1
    z2 = jnp.dot(mul, w2.astype(jnp.bfloat16), preferred_element_type=jnp.float32) + b2
    return _leaky_relu(z1) + _leaky_relu(z2)


if __name__ == "__main__":
    key = jax.random.PRNGKey(0)
    N, in_dim, out_dim = 512, 32, 32

    k_x, k_adj, k_mask, k_w1, k_w2, k_b1, k_b2 = jax.random.split(key, 7)

    # Node embeddings.
    x = jax.random.normal(k_x, (N, in_dim), dtype=jnp.float32)

    # Dense attention adjacency: random sparse mask, row-softmax over edges
    # (mimics the normalized per-edge attention 'a' in KGAT).
    mask = (jax.random.uniform(k_mask, (N, N)) < 0.1).astype(jnp.float32)
    logits = jax.random.normal(k_adj, (N, N), dtype=jnp.float32)
    masked = jnp.where(mask > 0, logits, -1e9)
    adj = (jax.nn.softmax(masked, axis=-1) * mask).astype(jnp.float32)

    # Xavier-normal weights (stored as [in_dim, out_dim], i.e. pre-transposed).
    xavier_std = (2.0 / (in_dim + out_dim)) ** 0.5
    w1 = xavier_std * jax.random.normal(k_w1, (in_dim, out_dim), dtype=jnp.float32)
    w2 = xavier_std * jax.random.normal(k_w2, (in_dim, out_dim), dtype=jnp.float32)
    # nn.Linear bias default init: U(-1/sqrt(in_dim), 1/sqrt(in_dim))
    bound = 1.0 / (in_dim ** 0.5)
    b1 = jax.random.uniform(k_b1, (1, out_dim), minval=-bound, maxval=bound, dtype=jnp.float32)
    b2 = jax.random.uniform(k_b2, (1, out_dim), minval=-bound, maxval=bound, dtype=jnp.float32)

    # tile_m=256 rows per step, tile_k=128 exercises the K-tiled accumulator (grid = (2, 4)).
    out = kgat_layer_forward(adj, x, w1, b1, w2, b2, tile_m=256, tile_k=128)
    out = jax.block_until_ready(out)

    ref = _reference(adj, x, w1, b1, w2, b2)
    assert out.shape == (N, out_dim)
    assert jnp.allclose(out, ref, atol=5e-3, rtol=5e-3)

    print("KERNEL_OK")
</pallas_src>

<mosaic_0001>
module attributes {stable_mosaic.version = 11 : i64} {
  func.func @kgat_kernel(%arg0: i32, %arg1: i32, %arg2: memref<256x128xbf16, #tpu.memory_space<vmem>>, %arg3: memref<128x32xbf16, #tpu.memory_space<vmem>>, %arg4: memref<256x32xbf16, #tpu.memory_space<vmem>>, %arg5: memref<64x64xbf16, #tpu.memory_space<vmem>>, %arg6: memref<1x64xf32, #tpu.memory_space<vmem>>, %arg7: memref<256x32xf32, #tpu.memory_space<vmem>>, %arg8: memref<256x32xf32, #tpu.memory_space<vmem>>) attributes {dimension_semantics = [#tpu.dimension_semantics<parallel>, #tpu.dimension_semantics<arbitrary>], iteration_bounds = array<i64: 2, 4>, scalar_prefetch = 0 : i64, scratch_operands = 1 : i64, tpu.core_type = #tpu.core_type<tc>, window_params = [{transform_indices = @transform_0, window_bounds = array<i64: 256, 128>}, {transform_indices = @transform_1, window_bounds = array<i64: 128, 32>}, {transform_indices = @transform_2, window_bounds = array<i64: 256, 32>}, {pipeline_mode = #tpu.pipeline_mode<synchronous>, transform_indices = @transform_3, window_bounds = array<i64: 64, 64>}, {pipeline_mode = #tpu.pipeline_mode<synchronous>, transform_indices = @transform_4, window_bounds = array<i64: 1, 64>}, {transform_indices = @transform_5, window_bounds = array<i64: 256, 32>}]} {
    %c0_i32 = arith.constant 0 : i32
    %0 = arith.cmpi eq, %arg1, %c0_i32 : i32
    %1 = arith.extui %0 : i1 to i32
    %c0_i32_0 = arith.constant 0 : i32
    %2 = arith.cmpi ne, %1, %c0_i32_0 : i32
    scf.if %2 {
      %cst_9 = arith.constant 0.000000e+00 : f32
      %12 = vector.broadcast %cst_9 : f32 to vector<256x32xf32>
      %c0_10 = arith.constant 0 : index
      %c0_11 = arith.constant 0 : index
      %13 = vector.load %arg8[%c0_10, %c0_11] : memref<256x32xf32, #tpu.memory_space<vmem>>, vector<256x32xf32>
      tpu.vector_store %arg8[%c0_10, %c0_11], %12 {strides = array<i32>} : memref<256x32xf32, #tpu.memory_space<vmem>>, vector<256x32xf32>,
    } else {
    }
    %c0 = arith.constant 0 : index
    %c0_1 = arith.constant 0 : index
    %3 = vector.load %arg8[%c0, %c0_1] : memref<256x32xf32, #tpu.memory_space<vmem>>, vector<256x32xf32>
    %c0_2 = arith.constant 0 : index
    %c0_3 = arith.constant 0 : index
    %4 = vector.load %arg2[%c0_2, %c0_3] : memref<256x128xbf16, #tpu.memory_space<vmem>>, vector<256x128xbf16>
    %c0_4 = arith.constant 0 : index
    %c0_5 = arith.constant 0 : index
    %5 = vector.load %arg3[%c0_4, %c0_5] : memref<128x32xbf16, #tpu.memory_space<vmem>>, vector<128x32xbf16>
    %cst = arith.constant dense<0.000000e+00> : vector<256x32xf32>
    %6 = tpu.matmul %4, %5, %cst {dimension_numbers = #tpu.dot_dimension_numbers<[1], [0], [0], [1], [0, 0, 1, 1], [], []>} : vector<256x128xbf16>, vector<128x32xbf16>, vector<256x32xf32> -> vector<256x32xf32>
    %7 = arith.addf %3, %6 : vector<256x32xf32>
    %c0_6 = arith.constant 0 : index
    %c0_7 = arith.constant 0 : index
    %8 = vector.load %arg8[%c0_6, %c0_7] : memref<256x32xf32, #tpu.memory_space<vmem>>, vector<256x32xf32>
    tpu.vector_store %arg8[%c0_6, %c0_7], %7 {strides = array<i32>} : memref<256x32xf32, #tpu.memory_space<vmem>>, vector<256x32xf32>,
    %c3_i32 = arith.constant 3 : i32
    %9 = arith.cmpi eq, %arg1, %c3_i32 : i32
    %10 = arith.extui %9 : i1 to i32
    %c0_i32_8 = arith.constant 0 : i32
    %11 = arith.cmpi ne, %10, %c0_i32_8 : i32
    scf.if %11 {
      %c0_9 = arith.constant 0 : index
      %c0_10 = arith.constant 0 : index
      %12 = vector.load %arg8[%c0_9, %c0_10] : memref<256x32xf32, #tpu.memory_space<vmem>>, vector<256x32xf32>
      %c0_11 = arith.constant 0 : index
      %c0_12 = arith.constant 0 : index
      %13 = vector.load %arg4[%c0_11, %c0_12] : memref<256x32xbf16, #tpu.memory_space<vmem>>, vector<256x32xbf16>
      %14 = arith.extf %13 : vector<256x32xbf16> to vector<256x32xf32>
      %15 = arith.addf %14, %12 : vector<256x32xf32>
      %16 = arith.mulf %14, %12 : vector<256x32xf32>
      %17 = tpu.concatenate %15, %16 in 1 : vector<256x32xf32>, vector<256x32xf32> -> vector<256x64xf32>
      %18 = arith.truncf %17 : vector<256x64xf32> to vector<256x64xbf16>
      %c0_13 = arith.constant 0 : index
      %c0_14 = arith.constant 0 : index
      %19 = vector.load %arg5[%c0_13, %c0_14] : memref<64x64xbf16, #tpu.memory_space<vmem>>, vector<64x64xbf16>
      %cst_15 = arith.constant dense<0.000000e+00> : vector<256x64xf32>
      %20 = tpu.matmul %18, %19, %cst_15 {dimension_numbers = #tpu.dot_dimension_numbers<[1], [0], [0], [1], [0, 0, 1, 1], [], []>} : vector<256x64xbf16>, vector<64x64xbf16>, vector<256x64xf32> -> vector<256x64xf32>
      %c0_16 = arith.constant 0 : index
      %c0_17 = arith.constant 0 : index
      %21 = vector.load %arg6[%c0_16, %c0_17] : memref<1x64xf32, #tpu.memory_space<vmem>>, vector<1x64xf32>
      %22 = vector.broadcast %21 : vector<1x64xf32> to vector<256x64xf32>
      %23 = arith.addf %20, %22 : vector<256x64xf32>
      %24 = vector.extract_strided_slice %23 {offsets = [0, 0], sizes = [256, 32], strides = [1, 1]} : vector<256x64xf32> to vector<256x32xf32>
      %cst_18 = arith.constant 0.000000e+00 : f32
      %25 = vector.broadcast %cst_18 : f32 to vector<256x32xf32>
      %26 = arith.cmpf oge, %24, %25 : vector<256x32xf32>
      %cst_19 = arith.constant 0.00999999977 : f32
      %27 = vector.broadcast %cst_19 : f32 to vector<256x32xf32>
      %28 = arith.mulf %27, %24 : vector<256x32xf32>
      %29 = arith.select %26, %24, %28 : vector<256x32xi1>, vector<256x32xf32>
      %30 = vector.extract_strided_slice %23 {offsets = [0, 32], sizes = [256, 32], strides = [1, 1]} : vector<256x64xf32> to vector<256x32xf32>
      %cst_20 = arith.constant 0.000000e+00 : f32
      %31 = vector.broadcast %cst_20 : f32 to vector<256x32xf32>
      %32 = arith.cmpf oge, %30, %31 : vector<256x32xf32>
      %cst_21 = arith.constant 0.00999999977 : f32
      %33 = vector.broadcast %cst_21 : f32 to vector<256x32xf32>
      %34 = arith.mulf %33, %30 : vector<256x32xf32>
      %35 = arith.select %32, %30, %34 : vector<256x32xi1>, vector<256x32xf32>
      %36 = arith.addf %29, %35 : vector<256x32xf32>
      %c0_22 = arith.constant 0 : index
      %c0_23 = arith.constant 0 : index
      %37 = vector.load %arg7[%c0_22, %c0_23] : memref<256x32xf32, #tpu.memory_space<vmem>>, vector<256x32xf32>
      tpu.vector_store %arg7[%c0_22, %c0_23], %36 {strides = array<i32>} : memref<256x32xf32, #tpu.memory_space<vmem>>, vector<256x32xf32>,
    } else {
    }
    return
  }
  func.func @transform_0(%arg0: i32, %arg1: i32) -> (i32, i32) {
    %c0_i32 = arith.constant 0 : i32
    return %arg0, %arg1 : i32, i32
  }
  func.func @transform_1(%arg0: i32, %arg1: i32) -> (i32, i32) {
    %c0_i32 = arith.constant 0 : i32
    %c0_i32_0 = arith.constant 0 : i32
    return %arg1, %c0_i32 : i32, i32
  }
  func.func @transform_2(%arg0: i32, %arg1: i32) -> (i32, i32) {
    %c0_i32 = arith.constant 0 : i32
    %c0_i32_0 = arith.constant 0 : i32
    return %arg0, %c0_i32 : i32, i32
  }
  func.func @transform_3(%arg0: i32, %arg1: i32) -> (i32, i32) {
    %c0_i32 = arith.constant 0 : i32
    %c0_i32_0 = arith.constant 0 : i32
    %c0_i32_1 = arith.constant 0 : i32
    return %c0_i32, %c0_i32_0 : i32, i32
  }
  func.func @transform_4(%arg0: i32, %arg1: i32) -> (i32, i32) {
    %c0_i32 = arith.constant 0 : i32
    %c0_i32_0 = arith.constant 0 : i32
    %c0_i32_1 = arith.constant 0 : i32
    return %c0_i32, %c0_i32_0 : i32, i32
  }
  func.func @transform_5(%arg0: i32, %arg1: i32) -> (i32, i32) {
    %c0_i32 = arith.constant 0 : i32
    %c0_i32_0 = arith.constant 0 : i32
    return %arg0, %c0_i32 : i32, i32
  }
}

</mosaic_0001>

<llo_original>
// kernel: tpu_custom_call.1
$region0: #{tpu_custom_call.1}
  #allocation0 [shape = 'u32[]', space=smem, size = 0x4, offset = 0x4, fixed_abs, tag = 'smem constant byte address 0x4 - core index']
  #allocation1 [shape = 'u32[144,128]{1,0:T(1,128)}', space=vmem, size = 0x12000, scoped, tag = 'internal scratch']
  #allocation2 [shape = 'f32[256,32]{1,0:T(8,128)}', space=vmem, size = 0x20000, scoped, tag = 'scratch operand']
  %s0 = inlined_call_operand.hbm [shape: bf16[512,512], index: 0, kind: input, shape index: {}]
  %s1 = inlined_call_operand.vmem [shape: bf16[512,32], index: 1, kind: input, shape index: {}]
  %s2 = inlined_call_operand.vmem [shape: bf16[512,32], index: 2, kind: input, shape index: {}]
  %s3 = inlined_call_operand.vmem [shape: bf16[64,64], index: 3, kind: input, shape index: {}]
  %s4 = inlined_call_operand.vmem [shape: f32[1,64], index: 4, kind: input, shape index: {}]
  %s5 = inlined_call_operand.vmem [shape: f32[512,32], index: 5, kind: output, shape index: {}]
  %s6 = sld [smem:[#allocation0]]
  $region65: #{tpu_custom_call.1} parent=0
    _
  %s8 = ssub.s32 1, %s6
  %s9 = scalar_select 0, %s8, %s6
  $region1: #{tpu_custom_call.1} parent=0
    #allocation3 [shape = 'u8[131072]{0}', space=vmem, size = 0x20000, scoped, tag = 'input window, operand 0']
    #allocation4 [shape = 's32[2]{0}', space=sflag, size = 0x8, scoped, tag = 'scoped memory for tpu_custom_call.1']
    %10 = vsyncpa [#allocation4], 0
    %s11 = scalar_lea.sflag [#allocation4], 1
    %12 = vsyncpa %s11, 0
    loop: start=0, step=1, limit=10
    $region2: #{tpu_custom_call.1} parent=1 // loop_pre_header
      _
    $region3: #{tpu_custom_call.1} parent=1 // loop_header
      %s14 = sphi 0, %s18
      %p15 = scmp.ge.s32.totalorder %s14, 10
      %s21 = sphi 0, %s33
      %s22 = sphi 0, %s29
      %s23 = sphi 0, %s21
      %s24 = sphi 0, %s22
      %s25 = sphi 0, %s23
      %s26 = sphi 0, %s24
      %s38 = sphi 0, %s40
      %s41 = sphi 0, %s38
      %s42 = sphi 0, %s41
      %s58 = sphi 0, %s42
      %s64 = sphi 0, %s66
      %s67 = sphi 0, %s64
      %s68 = sphi 0, %s67
      %s84 = sphi 0, %s68
      %s90 = sphi 0, %s92
      %s93 = sphi 0, %s90
      %s94 = sphi 0, %s93
      %s110 = sphi 0, %s94
      %s114 = sphi 0, %s114
      %s116 = sphi 0, %s114
      %s117 = sphi 0, %s116
      %s131 = sphi 0, %s117
      %s135 = sphi 0, %s135
      %s137 = sphi 0, %s135
      %s138 = sphi 0, %s137
      %s152 = sphi 0, %s138
      %s158 = sphi 0, %s160
      %s161 = sphi 0, %s158
      %s162 = sphi 0, %s161
      %s178 = sphi 0, %s162
    $region4: #{tpu_custom_call.1} parent=1 // loop_header_branch
      %17 = sbr.rel (%p15) target = $region8
    $region5: #{tpu_custom_call.1} parent=1 // loop_body
      %s19 = ssub.s32 %s14, 1
      %s20 = ssub.s32 %s14, 2
      %s27 = sadd.s32 1, %s22
      %p28 = scmp.ge.s32.totalorder %s27, 4
      %s29 = scalar_select %p28, 0, %s27
      %s30 = sadd.s32 1, %s21
      %s31 = scalar_select %p28, %s30, %s21
      %p32 = scmp.ge.s32.totalorder %s31, 2
      %s33 = scalar_select %p32, 0, %s31
      %s34 = ssub.s32 %s21, %s33
      %s35 = ssub.s32 %s22, %s29
      %s36 = sor.u32 %s34, %s35
      %p37 = scmp.eq.s32.totalorder %s36, 0
      %s39 = sadd.s32 %s38, 1
      %s40 = scalar_select %p37, %s38, %s39
      %p43 = pneg %p37
      %p44 = scmp.eq.s32.totalorder %s14, 7
      %p45 = por %p43, %p44
      %p46 = scmp.ne.s32.totalorder %s38, %s41
      %p47 = scmp.eq.s32.totalorder %s14, 0
      %p48 = por %p46, %p47
      %p49 = scmp.ne.s32.totalorder %s38, %s41
      %p50 = scmp.eq.s32.totalorder %s19, 7
      %p51 = por %p49, %p50
      %p52 = scmp.ne.s32.totalorder %s41, %s42
      %p53 = scmp.eq.s32.totalorder %s19, 0
      %p54 = por %p52, %p53
      %p55 = scmp.ne.s32.totalorder %s41, %s42
      %p56 = scmp.eq.s32.totalorder %s20, 7
      %p57 = por %p55, %p56
      %p59 = scmp.ne.s32.totalorder %s42, %s58
      %p60 = scmp.eq.s32.totalorder %s20, 0
      %p61 = por %p59, %p60
      %s62 = ssub.s32 %s22, %s29
      %p63 = scmp.eq.s32.totalorder %s62, 0
      %s65 = sadd.s32 %s64, 1
      %s66 = scalar_select %p63, %s64, %s65
      %p69 = pneg %p63
      %p70 = scmp.eq.s32.totalorder %s14, 7
      %p71 = por %p69, %p70
      %p72 = scmp.ne.s32.totalorder %s64, %s67
      %p73 = scmp.eq.s32.totalorder %s14, 0
      %p74 = por %p72, %p73
      %p75 = scmp.ne.s32.totalorder %s64, %s67
      %p76 = scmp.eq.s32.totalorder %s19, 7
      %p77 = por %p75, %p76
      %p78 = scmp.ne.s32.totalorder %s67, %s68
      %p79 = scmp.eq.s32.totalorder %s19, 0
      %p80 = por %p78, %p79
      %p81 = scmp.ne.s32.totalorder %s67, %s68
      %p82 = scmp.eq.s32.totalorder %s20, 7
      %p83 = por %p81, %p82
      %p85 = scmp.ne.s32.totalorder %s68, %s84
      %p86 = scmp.eq.s32.totalorder %s20, 0
      %p87 = por %p85, %p86
      %s88 = ssub.s32 %s21, %s33
      %p89 = scmp.eq.s32.totalorder %s88, 0
      %s91 = sadd.s32 %s90, 1
      %s92 = scalar_select %p89, %s90, %s91
      %p95 = pneg %p89
      %p96 = scmp.eq.s32.totalorder %s14, 7
      %p97 = por %p95, %p96
      %p98 = scmp.ne.s32.totalorder %s90, %s93
      %p99 = scmp.eq.s32.totalorder %s14, 0
      %p100 = por %p98, %p99
      %p101 = scmp.ne.s32.totalorder %s90, %s93
      %p102 = scmp.eq.s32.totalorder %s19, 7
      %p103 = por %p101, %p102
      %p104 = scmp.ne.s32.totalorder %s93, %s94
      %p105 = scmp.eq.s32.totalorder %s19, 0
      %p106 = por %p104, %p105
      %p107 = scmp.ne.s32.totalorder %s93, %s94
      %p108 = scmp.eq.s32.totalorder %s20, 7
      %p109 = por %p107, %p108
      %p111 = scmp.ne.s32.totalorder %s94, %s110
      %p112 = scmp.eq.s32.totalorder %s20, 0
      %p113 = por %p111, %p112
      %s115 = sadd.s32 %s114, 1
      %p118 = scmp.eq.s32.totalorder %s14, 7
      %p119 = scmp.ne.s32.totalorder %s114, %s116
      %p120 = scmp.eq.s32.totalorder %s14, 0
      %p121 = por %p119, %p120
      %p122 = scmp.ne.s32.totalorder %s114, %s116
      %p123 = scmp.eq.s32.totalorder %s19, 7
      %p124 = por %p122, %p123
      %p125 = scmp.ne.s32.totalorder %s116, %s117
      %p126 = scmp.eq.s32.totalorder %s19, 0
      %p127 = por %p125, %p126
      %p128 = scmp.ne.s32.totalorder %s116, %s117
      %p129 = scmp.eq.s32.totalorder %s20, 7
      %p130 = por %p128, %p129
      %p132 = scmp.ne.s32.totalorder %s117, %s131
      %p133 = scmp.eq.s32.totalorder %s20, 0
      %p134 = por %p132, %p133
      %s136 = sadd.s32 %s135, 1
      %p139 = scmp.eq.s32.totalorder %s14, 7
      %p140 = scmp.ne.s32.totalorder %s135, %s137
      %p141 = scmp.eq.s32.totalorder %s14, 0
      %p142 = por %p140, %p141
      %p143 = scmp.ne.s32.totalorder %s135, %s137
      %p144 = scmp.eq.s32.totalorder %s19, 7
      %p145 = por %p143, %p144
      %p146 = scmp.ne.s32.totalorder %s137, %s138
      %p147 = scmp.eq.s32.totalorder %s19, 0
      %p148 = por %p146, %p147
      %p149 = scmp.ne.s32.totalorder %s137, %s138
      %p150 = scmp.eq.s32.totalorder %s20, 7
      %p151 = por %p149, %p150
      %p153 = scmp.ne.s32.totalorder %s138, %s152
      %p154 = scmp.eq.s32.totalorder %s20, 0
      %p155 = por %p153, %p154
      %s156 = ssub.s32 %s21, %s33
      %p157 = scmp.eq.s32.totalorder %s156, 0
      %s159 = sadd.s32 %s158, 1
      %s160 = scalar_select %p157, %s158, %s159
      %p163 = pneg %p157
      %p164 = scmp.eq.s32.totalorder %s14, 7
      %p165 = por %p163, %p164
      %p166 = scmp.ne.s32.totalorder %s158, %s161
      %p167 = scmp.eq.s32.totalorder %s14, 0
      %p168 = por %p166, %p167
      %p169 = scmp.ne.s32.totalorder %s158, %s161
      %p170 = scmp.eq.s32.totalorder %s19, 7
      %p171 = por %p169, %p170
      %p172 = scmp.ne.s32.totalorder %s161, %s162
      %p173 = scmp.eq.s32.totalorder %s19, 0
      %p174 = por %p172, %p173
      %p175 = scmp.ne.s32.totalorder %s161, %s162
      %p176 = scmp.eq.s32.totalorder %s20, 7
      %p177 = por %p175, %p176
      %p179 = scmp.ne.s32.totalorder %s162, %s178
      %p180 = scmp.eq.s32.totalorder %s20, 0
      %p181 = por %p179, %p180
      %p182 = scmp.le.s32.totalorder 1, %s14
      %p183 = scmp.lt.s32.totalorder %s14, 9
      %p184 = pnand %p182, %p183
      %p185 = pneg %p184
      // Predicated region
      $region9: #{tpu_custom_call.1} parent=5 // pred_check
        _
      $region10: #{tpu_custom_call.1} parent=5 // pred_check_branch
        %187 = sbr.rel (%p184) target = $region12
      $region11: #{tpu_custom_call.1} parent=5 // pred_region
        %s188 = ssub.s32 %s14, 1
        // Predicated region
        $region13: #{tpu_custom_call.1} parent=11 // pred_check
          %p189 = pneg %p127
        $region14: #{tpu_custom_call.1} parent=11 // pred_check_branch
          %191 = sbr.rel (%p189) target = $region16
        $region15: #{tpu_custom_call.1} parent=11 // pred_region
          _
        $region16: #{tpu_custom_call.1} parent=11 // pred_fallthru
          _
        // Predicated region
        $region17: #{tpu_custom_call.1} parent=11 // pred_check
          %p192 = pneg %p148
        $region18: #{tpu_custom_call.1} parent=11 // pred_check_branch
          %194 = sbr.rel (%p192) target = $region20
        $region19: #{tpu_custom_call.1} parent=11 // pred_region
          _
        $region20: #{tpu_custom_call.1} parent=11 // pred_fallthru
          _
      $region12: #{tpu_custom_call.1} parent=5 // pred_fallthru
        _
      %p195 = scmp.lt.s32.totalorder %s14, 8
      // Predicated region
      $region21: #{tpu_custom_call.1} parent=5 // pred_check
        %p196 = pneg %p195
      $region22: #{tpu_custom_call.1} parent=5 // pred_check_branch
        %198 = sbr.rel (%p196) target = $region24
      $region23: #{tpu_custom_call.1} parent=5 // pred_region
        // Predicated region
        $region25: #{tpu_custom_call.1} parent=23 // pred_check
          %p199 = pneg %p48
        $region26: #{tpu_custom_call.1} parent=23 // pred_check_branch
          %201 = sbr.rel (%p199) target = $region28
        $region27: #{tpu_custom_call.1} parent=23 // pred_region
          %s202 = sand.u32 %s38, 1
          %s203 = scalar_lea.sflag [#allocation4], %s202
          %s204 = sand.u32 %s38, 1
          %s205 = smul.addr %s204, 128
          %s206 = scalar_lea.vmem [#allocation3], %s205
          %s207 = smul.u32 32, %s21
          %s209 = ssub.s32 2048, 2048
          %210 = vsyncadd %s203, %s209
          %s211 = smul.addr %s207, 4
          %s212 = sadd.s32 %s22, %s211
          %s213 = smul.addr %s212, 64
          %s214 = scalar_lea.hbm %s0, %s213
          %s215 = sshll.u32 %s206, 4
          %s216 = int_to_ptr.vmem [resolvable:$true] %s215
          %221 = dma.hbm_to_vmem [thread:$0]  %s214, 2048, %s216, %s203, 256, 64, 4
        $region28: #{tpu_custom_call.1} parent=23 // pred_fallthru
          _
        // Predicated region
        $region29: #{tpu_custom_call.1} parent=23 // pred_check
          %p222 = pneg %p74
        $region30: #{tpu_custom_call.1} parent=23 // pred_check_branch
          %224 = sbr.rel (%p222) target = $region32
        $region31: #{tpu_custom_call.1} parent=23 // pred_region
          %s225 = smul.u32 16, %s22
          %p226 = scmp.lt.s32.totalorder %s225, 63
          %s227 = scalar_select %p226, %s225, 63
          %s228 = smul.addr %s227, 4
          %s229 = scalar_lea.vmem %s1, %s228
          %s230 = smul.u32 16, %s22
        $region32: #{tpu_custom_call.1} parent=23 // pred_fallthru
          _
        // Predicated region
        $region33: #{tpu_custom_call.1} parent=23 // pred_check
          %p231 = pneg %p100
        $region34: #{tpu_custom_call.1} parent=23 // pred_check_branch
          %233 = sbr.rel (%p231) target = $region36
        $region35: #{tpu_custom_call.1} parent=23 // pred_region
          %s234 = smul.u32 32, %s21
          %p235 = scmp.lt.s32.totalorder %s234, 63
          %s236 = scalar_select %p235, %s234, 63
          %s237 = smul.addr %s236, 4
          %s238 = scalar_lea.vmem %s2, %s237
          %s239 = smul.u32 32, %s21
        $region36: #{tpu_custom_call.1} parent=23 // pred_fallthru
          _
      $region24: #{tpu_custom_call.1} parent=5 // pred_fallthru
        _
      %p240 = scmp.le.s32.totalorder 1, %s14
      %p241 = scmp.lt.s32.totalorder %s14, 9
      %p242 = pnand %p240, %p241
      %p243 = pneg %p242
      // Predicated region
      $region37: #{tpu_custom_call.1} parent=5 // pred_check
        _
      $region38: #{tpu_custom_call.1} parent=5 // pred_check_branch
        %245 = sbr.rel (%p242) target = $region40
      $region39: #{tpu_custom_call.1} parent=5 // pred_region
        %s246 = ssub.s32 %s14, 1
        %s247 = sand.u32 %s41, 1
        %s248 = scalar_lea.sflag [#allocation4], %s247
        %s249 = sand.u32 %s41, 1
        %s250 = smul.addr %s249, 128
        %s251 = scalar_lea.vmem [#allocation3], %s250
        // Predicated region
        $region41: #{tpu_custom_call.1} parent=39 // pred_check
          %p252 = pneg %p54
        $region42: #{tpu_custom_call.1} parent=39 // pred_check_branch
          %254 = sbr.rel (%p252) target = $region44
        $region43: #{tpu_custom_call.1} parent=39 // pred_region
          %255 = dma.done %s248, 2048
        $region44: #{tpu_custom_call.1} parent=39 // pred_fallthru
          _
        %s256 = sand.u32 %s41, 1
        %s257 = scalar_lea.sflag [#allocation4], %s256
        %s258 = sand.u32 %s41, 1
        %s259 = smul.addr %s258, 128
        %s260 = scalar_lea.vmem [#allocation3], %s259
        %p261 = pneg %p54
        %p262 = pneg %p51
        %s263 = smul.u32 16, %s24
        %p264 = scmp.lt.s32.totalorder %s263, 63
        %s265 = scalar_select %p264, %s263, 63
        %s266 = smul.addr %s265, 4
        %s267 = scalar_lea.vmem %s1, %s266
        %p268 = pneg %p80
        %p269 = pneg %p77
        %s270 = smul.u32 32, %s23
        %p271 = scmp.lt.s32.totalorder %s270, 63
        %s272 = scalar_select %p271, %s270, 63
        %s273 = smul.addr %s272, 4
        %s274 = scalar_lea.vmem %s2, %s273
        %p275 = pneg %p106
        %p276 = pneg %p103
        %p277 = pneg %p127
        %p278 = pneg %p124
        %p279 = pneg %p148
        %p280 = pneg %p145
        %p281 = pneg %p174
        %p282 = pneg %p171
        %s283 = smul.u32 32, %s23
        %p284 = scmp.lt.s32.totalorder %s283, 63
        %s285 = scalar_select %p284, %s283, 63
        %s286 = smul.addr %s285, 8
        %s287 = scalar_lea.vmem %s5, %s286
        %s288 = smul.u32 32, %s23
        %s289 = smul.u32 16, %s24
        %p290 = scmp.lt.s32.totalorder %s289, 63
        %s291 = scalar_select %p290, %s289, 63
        %s292 = smul.addr %s291, 4
        %s293 = scalar_lea.vmem %s1, %s292
        %s294 = smul.u32 16, %s24
        %s295 = smul.u32 32, %s23
        %p296 = scmp.lt.s32.totalorder %s295, 63
        %s297 = scalar_select %p296, %s295, 63
        %s298 = smul.addr %s297, 4
        %s299 = scalar_lea.vmem %s2, %s298
        %s300 = smul.u32 32, %s23
        %s301 = smul.u32 32, %s23
        %p302 = scmp.lt.s32.totalorder %s301, 63
        %s303 = scalar_select %p302, %s301, 63
        %s304 = smul.addr %s303, 8
        %s305 = scalar_lea.vmem %s5, %s304
        %s306 = smul.u32 32, %s23
        %p308 = scmp.eq.s32.totalorder %s24, 0
        // Predicated region
        $region45: #{tpu_custom_call.1} parent=39 // pred_check
          %p309 = pneg %p308
        $region46: #{tpu_custom_call.1} parent=39 // pred_check_branch
          %311 = sbr.rel (%p309) target = $region48
        $region47: #{tpu_custom_call.1} parent=39 // pred_region
          %vm312 = vcmask 261120
          %313 = vst.msk [vmem:[#allocation2] sm:$0xff] %vm312, 0.0
          %314 = vst.msk [vmem:[#allocation2 + $0x8] sm:$0xff] %vm312, 0.0
          %315 = vst.msk [vmem:[#allocation2 + $0x10] sm:$0xff] %vm312, 0.0
          %316 = vst.msk [vmem:[#allocation2 + $0x18] sm:$0xff] %vm312, 0.0
          %317 = vst.msk [vmem:[#allocation2 + $0x20] sm:$0xff] %vm312, 0.0
          %318 = vst.msk [vmem:[#allocation2 + $0x28] sm:$0xff] %vm312, 0.0
          %319 = vst.msk [vmem:[#allocation2 + $0x30] sm:$0xff] %vm312, 0.0
          %320 = vst.msk [vmem:[#allocation2 + $0x38] sm:$0xff] %vm312, 0.0
          %321 = vst.msk [vmem:[#allocation2 + $0x40] sm:$0xff] %vm312, 0.0
          %322 = vst.msk [vmem:[#allocation2 + $0x48] sm:$0xff] %vm312, 0.0
          %323 = vst.msk [vmem:[#allocation2 + $0x50] sm:$0xff] %vm312, 0.0
          %324 = vst.msk [vmem:[#allocation2 + $0x58] sm:$0xff] %vm312, 0.0
          %325 = vst.msk [vmem:[#allocation2 + $0x60] sm:$0xff] %vm312, 0.0
          %326 = vst.msk [vmem:[#allocation2 + $0x68] sm:$0xff] %vm312, 0.0
          %327 = vst.msk [vmem:[#allocation2 + $0x70] sm:$0xff] %vm312, 0.0
          %328 = vst.msk [vmem:[#allocation2 + $0x78] sm:$0xff] %vm312, 0.0
          %329 = vst.msk [vmem:[#allocation2 + $0x80] sm:$0xff] %vm312, 0.0
          %330 = vst.msk [vmem:[#allocation2 + $0x88] sm:$0xff] %vm312, 0.0
          %331 = vst.msk [vmem:[#allocation2 + $0x90] sm:$0xff] %vm312, 0.0
          %332 = vst.msk [vmem:[#allocation2 + $0x98] sm:$0xff] %vm312, 0.0
          %333 = vst.msk [vmem:[#allocation2 + $0xa0] sm:$0xff] %vm312, 0.0
          %334 = vst.msk [vmem:[#allocation2 + $0xa8] sm:$0xff] %vm312, 0.0
          %335 = vst.msk [vmem:[#allocation2 + $0xb0] sm:$0xff] %vm312, 0.0
          %336 = vst.msk [vmem:[#allocation2 + $0xb8] sm:$0xff] %vm312, 0.0
          %337 = vst.msk [vmem:[#allocation2 + $0xc0] sm:$0xff] %vm312, 0.0
          %338 = vst.msk [vmem:[#allocation2 + $0xc8] sm:$0xff] %vm312, 0.0
          %339 = vst.msk [vmem:[#allocation2 + $0xd0] sm:$0xff] %vm312, 0.0
          %340 = vst.msk [vmem:[#allocation2 + $0xd8] sm:$0xff] %vm312, 0.0
          %341 = vst.msk [vmem:[#allocation2 + $0xe0] sm:$0xff] %vm312, 0.0
          %342 = vst.msk [vmem:[#allocation2 + $0xe8] sm:$0xff] %vm312, 0.0
          %343 = vst.msk [vmem:[#allocation2 + $0xf0] sm:$0xff] %vm312, 0.0
          %344 = vst.msk [vmem:[#allocation2 + $0xf8] sm:$0xff] %vm312, 0.0
        $region48: #{tpu_custom_call.1} parent=39 // pred_fallthru
          _
        %v345 = vld [vmem:[#allocation2] sm:$0xff]
        %v346 = vld [vmem:[#allocation2 + $0x8] sm:$0xff]
        %v347 = vld [vmem:[#allocation2 + $0x10] sm:$0xff]
        %v348 = vld [vmem:[#allocation2 + $0x18] sm:$0xff]
        %v349 = vld [vmem:[#allocation2 + $0x20] sm:$0xff]
        %v350 = vld [vmem:[#allocation2 + $0x28] sm:$0xff]
        %v351 = vld [vmem:[#allocation2 + $0x30] sm:$0xff]
        %v352 = vld [vmem:[#allocation2 + $0x38] sm:$0xff]
        %v353 = vld [vmem:[#allocation2 + $0x40] sm:$0xff]
        %v354 = vld [vmem:[#allocation2 + $0x48] sm:$0xff]
        %v355 = vld [vmem:[#allocation2 + $0x50] sm:$0xff]
        %v356 = vld [vmem:[#allocation2 + $0x58] sm:$0xff]
        %v357 = vld [vmem:[#allocation2 + $0x60] sm:$0xff]
        %v358 = vld [vmem:[#allocation2 + $0x68] sm:$0xff]
        %v359 = vld [vmem:[#allocation2 + $0x70] sm:$0xff]
        %v360 = vld [vmem:[#allocation2 + $0x78] sm:$0xff]
        %v361 = vld [vmem:[#allocation2 + $0x80] sm:$0xff]
        %v362 = vld [vmem:[#allocation2 + $0x88] sm:$0xff]
        %v363 = vld [vmem:[#allocation2 + $0x90] sm:$0xff]
        %v364 = vld [vmem:[#allocation2 + $0x98] sm:$0xff]
        %v365 = vld [vmem:[#allocation2 + $0xa0] sm:$0xff]
        %v366 = vld [vmem:[#allocation2 + $0xa8] sm:$0xff]
        %v367 = vld [vmem:[#allocation2 + $0xb0] sm:$0xff]
        %v368 = vld [vmem:[#allocation2 + $0xb8] sm:$0xff]
        %v369 = vld [vmem:[#allocation2 + $0xc0] sm:$0xff]
        %v370 = vld [vmem:[#allocation2 + $0xc8] sm:$0xff]
        %v371 = vld [vmem:[#allocation2 + $0xd0] sm:$0xff]
        %v372 = vld [vmem:[#allocation2 + $0xd8] sm:$0xff]
        %v373 = vld [vmem:[#allocation2 + $0xe0] sm:$0xff]
        %v374 = vld [vmem:[#allocation2 + $0xe8] sm:$0xff]
        %v375 = vld [vmem:[#allocation2 + $0xf0] sm:$0xff]
        %v376 = vld [vmem:[#allocation2 + $0xf8] sm:$0xff]
        %v377 = vld [vmem:[%s251] sm:$0xf]
        %v378 = vld [vmem:[%s251 + $0x4] sm:$0xf]
        %v379 = vld [vmem:[%s251 + $0x8] sm:$0xf]
        %v380 = vld [vmem:[%s251 + $0xc] sm:$0xf]
        %v381 = vld [vmem:[%s251 + $0x10] sm:$0xf]
        %v382 = vld [vmem:[%s251 + $0x14] sm:$0xf]
        %v383 = vld [vmem:[%s251 + $0x18] sm:$0xf]
        %v384 = vld [vmem:[%s251 + $0x1c] sm:$0xf]
        %v385 = vld [vmem:[%s251 + $0x20] sm:$0xf]
        %v386 = vld [vmem:[%s251 + $0x24] sm:$0xf]
        %v387 = vld [vmem:[%s251 + $0x28] sm:$0xf]
        %v388 = vld [vmem:[%s251 + $0x2c] sm:$0xf]
        %v389 = vld [vmem:[%s251 + $0x30] sm:$0xf]
        %v390 = vld [vmem:[%s251 + $0x34] sm:$0xf]
        %v391 = vld [vmem:[%s251 + $0x38] sm:$0xf]
        %v392 = vld [vmem:[%s251 + $0x3c] sm:$0xf]
        %v393 = vld [vmem:[%s251 + $0x40] sm:$0xf]
        %v394 = vld [vmem:[%s251 + $0x44] sm:$0xf]
        %v395 = vld [vmem:[%s251 + $0x48] sm:$0xf]
        %v396 = vld [vmem:[%s251 + $0x4c] sm:$0xf]
        %v397 = vld [vmem:[%s251 + $0x50] sm:$0xf]
        %v398 = vld [vmem:[%s251 + $0x54] sm:$0xf]
        %v399 = vld [vmem:[%s251 + $0x58] sm:$0xf]
        %v400 = vld [vmem:[%s251 + $0x5c] sm:$0xf]
        %v401 = vld [vmem:[%s251 + $0x60] sm:$0xf]
        %v402 = vld [vmem:[%s251 + $0x64] sm:$0xf]
        %v403 = vld [vmem:[%s251 + $0x68] sm:$0xf]
        %v404 = vld [vmem:[%s251 + $0x6c] sm:$0xf]
        %v405 = vld [vmem:[%s251 + $0x70] sm:$0xf]
        %v406 = vld [vmem:[%s251 + $0x74] sm:$0xf]
        %v407 = vld [vmem:[%s251 + $0x78] sm:$0xf]
        %v408 = vld [vmem:[%s251 + $0x7c] sm:$0xf]
        %v409 = vld [vmem:[%s293] sm:$0xf]
        %v410 = vld [vmem:[%s293 + $0x4] sm:$0xf]
        %v411 = vld [vmem:[%s293 + $0x8] sm:$0xf]
        %v412 = vld [vmem:[%s293 + $0xc] sm:$0xf]
        %v413 = vld [vmem:[%s293 + $0x10] sm:$0xf]
        %v414 = vld [vmem:[%s293 + $0x14] sm:$0xf]
        %v415 = vld [vmem:[%s293 + $0x18] sm:$0xf]
        %v416 = vld [vmem:[%s293 + $0x1c] sm:$0xf]
        %v417 = vld [vmem:[%s293 + $0x20] sm:$0xf]
        %v418 = vld [vmem:[%s293 + $0x24] sm:$0xf]
        %v419 = vld [vmem:[%s293 + $0x28] sm:$0xf]
        %v420 = vld [vmem:[%s293 + $0x2c] sm:$0xf]
        %v421 = vld [vmem:[%s293 + $0x30] sm:$0xf]
        %v422 = vld [vmem:[%s293 + $0x34] sm:$0xf]
        %v423 = vld [vmem:[%s293 + $0x38] sm:$0xf]
        %v424 = vld [vmem:[%s293 + $0x3c] sm:$0xf]
        %v457 = vunpack.c.l.b16 %v377
        %v458 = vunpack.c.l.b16 %v378
        %v459 = vunpack.c.l.b16 %v379
        %v460 = vunpack.c.l.b16 %v380
        %v461 = vunpack.c.l.b16 %v381
        %v462 = vunpack.c.l.b16 %v382
        %v463 = vunpack.c.l.b16 %v383
        %v464 = vunpack.c.l.b16 %v384
        %v465 = vunpack.c.l.b16 %v385
        %v466 = vunpack.c.l.b16 %v386
        %v467 = vunpack.c.l.b16 %v387
        %v468 = vunpack.c.l.b16 %v388
        %v469 = vunpack.c.l.b16 %v389
        %v470 = vunpack.c.l.b16 %v390
        %v471 = vunpack.c.l.b16 %v391
        %v472 = vunpack.c.l.b16 %v392
        %v473 = vunpack.c.l.b16 %v393
        %v474 = vunpack.c.l.b16 %v394
        %v475 = vunpack.c.l.b16 %v395
        %v476 = vunpack.c.l.b16 %v396
        %v477 = vunpack.c.l.b16 %v397
        %v478 = vunpack.c.l.b16 %v398
        %v479 = vunpack.c.l.b16 %v399
        %v480 = vunpack.c.l.b16 %v400
        %v481 = vunpack.c.l.b16 %v401
        %v482 = vunpack.c.l.b16 %v402
        %v483 = vunpack.c.l.b16 %v403
        %v484 = vunpack.c.l.b16 %v404
        %v485 = vunpack.c.l.b16 %v405
        %v486 = vunpack.c.l.b16 %v406
        %v487 = vunpack.c.l.b16 %v407
        %v488 = vunpack.c.l.b16 %v408
        %v489 = vpack.c.b16 %v458, %v457
        %v490 = vpack.c.b16 %v460, %v459
        %v491 = vpack.c.b16 %v462, %v461
        %v492 = vpack.c.b16 %v464, %v463
        %v493 = vpack.c.b16 %v466, %v465
        %v494 = vpack.c.b16 %v468, %v467
        %v495 = vpack.c.b16 %v470, %v469
        %v496 = vpack.c.b16 %v472, %v471
        %v497 = vpack.c.b16 %v474, %v473
        %v498 = vpack.c.b16 %v476, %v475
        %v499 = vpack.c.b16 %v478, %v477
        %v500 = vpack.c.b16 %v480, %v479
        %v501 = vpack.c.b16 %v482, %v481
        %v502 = vpack.c.b16 %v484, %v483
        %v503 = vpack.c.b16 %v486, %v485
        %v504 = vpack.c.b16 %v488, %v487
        %v537 = vunpack.c.l.b16 %v409
        %v538 = vunpack.c.l.b16 %v410
        %v539 = vunpack.c.l.b16 %v411
        %v540 = vunpack.c.l.b16 %v412
        %v541 = vunpack.c.l.b16 %v413
        %v542 = vunpack.c.l.b16 %v414
        %v543 = vunpack.c.l.b16 %v415
        %v544 = vunpack.c.l.b16 %v416
        %v545 = vunpack.c.l.b16 %v417
        %v546 = vunpack.c.l.b16 %v418
        %v547 = vunpack.c.l.b16 %v419
        %v548 = vunpack.c.l.b16 %v420
        %v549 = vunpack.c.l.b16 %v421
        %v550 = vunpack.c.l.b16 %v422
        %v551 = vunpack.c.l.b16 %v423
        %v552 = vunpack.c.l.b16 %v424
        %v553 = vpack.c.b16 %v538, %v537
        %v554 = vpack.c.b16 %v540, %v539
        %v555 = vpack.c.b16 %v542, %v541
        %v556 = vpack.c.b16 %v544, %v543
        %v557 = vpack.c.b16 %v546, %v545
        %v558 = vpack.c.b16 %v548, %v547
        %v559 = vpack.c.b16 %v550, %v549
        %v560 = vpack.c.b16 %v552, %v551
        %569 = vmatprep.subr.bf16.mxu0 0
        %570 = vmatpush1.bf16.msra.mxu0 %v553
        %571 = vmatprep.subr.bf16.mxu0 0
        %572 = vmatpush1.bf16.msra.mxu0 %v554
        %573 = vmatprep.subr.bf16.mxu0 0
        %574 = vmatpush1.bf16.msra.mxu0 %v555
        %575 = vmatprep.subr.bf16.mxu0 0
        %576 = vmatpush1.bf16.msra.mxu0 %v556
        %577 = vmatprep.subr.bf16.mxu0 0
        %578 = vmatpush1.bf16.msra.mxu0 %v557
        %579 = vmatprep.subr.bf16.mxu0 0
        %580 = vmatpush1.bf16.msra.mxu0 %v558
        %581 = vmatprep.subr.bf16.mxu0 0
        %582 = vmatpush1.bf16.msra.mxu0 %v559
        %583 = vmatprep.subr.bf16.mxu0 0
        %584 = vmatpush1.bf16.msra.mxu0 %v560
        %585 = vmatprep.subr.bf16.mxu0 0
        %586 = vmatpush1.bf16.msra.mxu0 0
        %587 = vmatprep.subr.bf16.mxu0 0
        %588 = vmatpush1.bf16.msra.mxu0 0
        %589 = vmatprep.subr.bf16.mxu0 0
        %590 = vmatpush1.bf16.msra.mxu0 0
        %591 = vmatprep.subr.bf16.mxu0 0
        %592 = vmatpush1.bf16.msra.mxu0 0
        %593 = vmatprep.subr.bf16.mxu0 0
        %594 = vmatpush1.bf16.msra.mxu0 0
        %595 = vmatprep.subr.bf16.mxu0 0
        %596 = vmatpush1.bf16.msra.mxu0 0
        %597 = vmatprep.subr.bf16.mxu0 0
        %598 = vmatpush1.bf16.msra.mxu0 0
        %599 = vmatprep.subr.bf16.mxu0 0
        %600 = vmatpush1.bf16.msra.mxu0 0
        %601 = vmatprep.mubr.bf16.mxu0 0
        %602 = vmatmul.mubr.bf16.gmra.mrb[0].mxu0 %v489
        %v603 = vpop.f32.mrb[0].mxu0
        %v604 = vadd.f32 0.0, %v603
        %v605 = vpop.f32.mrb[0].mxu0
        %v606 = vpop.f32.mrb[0].mxu0
        %v607 = vadd.f32 0.0, %v606
        %v608 = vpop.f32.mrb[0].mxu0
        %609 = vmatprep.mubr.bf16.mxu0 0
        %610 = vmatmul.mubr.bf16.gmra.mrb[0].mxu0 %v490
        %v611 = vpop.f32.mrb[0].mxu0
        %v612 = vadd.f32 0.0, %v611
        %v613 = vpop.f32.mrb[0].mxu0
        %v614 = vpop.f32.mrb[0].mxu0
        %v615 = vadd.f32 0.0, %v614
        %v616 = vpop.f32.mrb[0].mxu0
        %617 = vmatprep.mubr.bf16.mxu0 0
        %618 = vmatmul.mubr.bf16.gmra.mrb[0].mxu0 %v491
        %v619 = vpop.f32.mrb[0].mxu0
        %v620 = vadd.f32 0.0, %v619
        %v621 = vpop.f32.mrb[0].mxu0
        %v622 = vpop.f32.mrb[0].mxu0
        %v623 = vadd.f32 0.0, %v622
        %v624 = vpop.f32.mrb[0].mxu0
        %625 = vmatprep.mubr.bf16.mxu0 0
        %626 = vmatmul.mubr.bf16.gmra.mrb[0].mxu0 %v492
        %v627 = vpop.f32.mrb[0].mxu0
        %v628 = vadd.f32 0.0, %v627
        %v629 = vpop.f32.mrb[0].mxu0
        %v630 = vpop.f32.mrb[0].mxu0
        %v631 = vadd.f32 0.0, %v630
        %v632 = vpop.f32.mrb[0].mxu0
        %633 = vmatprep.mubr.bf16.mxu0 0
        %634 = vmatmul.mubr.bf16.gmra.mrb[0].mxu0 %v493
        %v635 = vpop.f32.mrb[0].mxu0
        %v636 = vadd.f32 0.0, %v635
        %v637 = vpop.f32.mrb[0].mxu0
        %v638 = vpop.f32.mrb[0].mxu0
        %v639 = vadd.f32 0.0, %v638
        %v640 = vpop.f32.mrb[0].mxu0
        %641 = vmatprep.mubr.bf16.mxu0 0
        %642 = vmatmul.mubr.bf16.gmra.mrb[0].mxu0 %v494
        %v643 = vpop.f32.mrb[0].mxu0
        %v644 = vadd.f32 0.0, %v643
        %v645 = vpop.f32.mrb[0].mxu0
        %v646 = vpop.f32.mrb[0].mxu0
        %v647 = vadd.f32 0.0, %v646
        %v648 = vpop.f32.mrb[0].mxu0
        %649 = vmatprep.mubr.bf16.mxu0 0
        %650 = vmatmul.mubr.bf16.gmra.mrb[0].mxu0 %v495
        %v651 = vpop.f32.mrb[0].mxu0
        %v652 = vadd.f32 0.0, %v651
        %v653 = vpop.f32.mrb[0].mxu0
        %v654 = vpop.f32.mrb[0].mxu0
        %v655 = vadd.f32 0.0, %v654
        %v656 = vpop.f32.mrb[0].mxu0
        %657 = vmatprep.mubr.bf16.mxu0 0
        %658 = vmatmul.mubr.bf16.gmra.mrb[0].mxu0 %v496
        %v659 = vpop.f32.mrb[0].mxu0
        %v660 = vadd.f32 0.0, %v659
        %v661 = vpop.f32.mrb[0].mxu0
        %v662 = vpop.f32.mrb[0].mxu0
        %v663 = vadd.f32 0.0, %v662
        %v664 = vpop.f32.mrb[0].mxu0
        %665 = vmatprep.mubr.bf16.mxu0 0
        %666 = vmatmul.mubr.bf16.gmra.mrb[0].mxu0 %v497
        %v667 = vpop.f32.mrb[0].mxu0
        %v668 = vadd.f32 0.0, %v667
        %v669 = vpop.f32.mrb[0].mxu0
        %v670 = vpop.f32.mrb[0].mxu0
        %v671 = vadd.f32 0.0, %v670
        %v672 = vpop.f32.mrb[0].mxu0
        %673 = vmatprep.mubr.bf16.mxu0 0
        %674 = vmatmul.mubr.bf16.gmra.mrb[0].mxu0 %v498
        %v675 = vpop.f32.mrb[0].mxu0
        %v676 = vadd.f32 0.0, %v675
        %v677 = vpop.f32.mrb[0].mxu0
        %v678 = vpop.f32.mrb[0].mxu0
        %v679 = vadd.f32 0.0, %v678
        %v680 = vpop.f32.mrb[0].mxu0
        %681 = vmatprep.mubr.bf16.mxu0 0
        %682 = vmatmul.mubr.bf16.gmra.mrb[0].mxu0 %v499
        %v683 = vpop.f32.mrb[0].mxu0
        %v684 = vadd.f32 0.0, %v683
        %v685 = vpop.f32.mrb[0].mxu0
        %v686 = vpop.f32.mrb[0].mxu0
        %v687 = vadd.f32 0.0, %v686
        %v688 = vpop.f32.mrb[0].mxu0
        %689 = vmatprep.mubr.bf16.mxu0 0
        %690 = vmatmul.mubr.bf16.gmra.mrb[0].mxu0 %v500
        %v691 = vpop.f32.mrb[0].mxu0
        %v692 = vadd.f32 0.0, %v691
        %v693 = vpop.f32.mrb[0].mxu0
        %v694 = vpop.f32.mrb[0].mxu0
        %v695 = vadd.f32 0.0, %v694
        %v696 = vpop.f32.mrb[0].mxu0
        %697 = vmatprep.mubr.bf16.mxu0 0
        %698 = vmatmul.mubr.bf16.gmra.mrb[0].mxu0 %v501
        %v699 = vpop.f32.mrb[0].mxu0
        %v700 = vadd.f32 0.0, %v699
        %v701 = vpop.f32.mrb[0].mxu0
        %v702 = vpop.f32.mrb[0].mxu0
        %v703 = vadd.f32 0.0, %v702
        %v704 = vpop.f32.mrb[0].mxu0
        %705 = vmatprep.mubr.bf16.mxu0 0
        %706 = vmatmul.mubr.bf16.gmra.mrb[0].mxu0 %v502
        %v707 = vpop.f32.mrb[0].mxu0
        %v708 = vadd.f32 0.0, %v707
        %v709 = vpop.f32.mrb[0].mxu0
        %v710 = vpop.f32.mrb[0].mxu0
        %v711 = vadd.f32 0.0, %v710
        %v712 = vpop.f32.mrb[0].mxu0
        %713 = vmatprep.mubr.bf16.mxu0 0
        %714 = vmatmul.mubr.bf16.gmra.mrb[0].mxu0 %v503
        %v715 = vpop.f32.mrb[0].mxu0
        %v716 = vadd.f32 0.0, %v715
        %v717 = vpop.f32.mrb[0].mxu0
        %v718 = vpop.f32.mrb[0].mxu0
        %v719 = vadd.f32 0.0, %v718
        %v720 = vpop.f32.mrb[0].mxu0
        %721 = vmatprep.mubr.bf16.mxu0 0
        %722 = vmatmul.mubr.bf16.gmra.mrb[0].mxu0 %v504
        %v723 = vpop.f32.mrb[0].mxu0
        %v724 = vadd.f32 0.0, %v723
        %v725 = vpop.f32.mrb[0].mxu0
        %v726 = vpop.f32.mrb[0].mxu0
        %v727 = vadd.f32 0.0, %v726
        %v728 = vpop.f32.mrb[0].mxu0
        %729 = vdwg.mxu0
        %v730 = vadd.f32 %v345, %v604
        %v731 = vadd.f32 %v346, %v607
        %v732 = vadd.f32 %v347, %v612
        %v733 = vadd.f32 %v348, %v615
        %v734 = vadd.f32 %v349, %v620
        %v735 = vadd.f32 %v350, %v623
        %v736 = vadd.f32 %v351, %v628
        %v737 = vadd.f32 %v352, %v631
        %v738 = vadd.f32 %v353, %v636
        %v739 = vadd.f32 %v354, %v639
        %v740 = vadd.f32 %v355, %v644
        %v741 = vadd.f32 %v356, %v647
        %v742 = vadd.f32 %v357, %v652
        %v743 = vadd.f32 %v358, %v655
        %v744 = vadd.f32 %v359, %v660
        %v745 = vadd.f32 %v360, %v663
        %v746 = vadd.f32 %v361, %v668
        %v747 = vadd.f32 %v362, %v671
        %v748 = vadd.f32 %v363, %v676
        %v749 = vadd.f32 %v364, %v679
        %v750 = vadd.f32 %v365, %v684
        %v751 = vadd.f32 %v366, %v687
        %v752 = vadd.f32 %v367, %v692
        %v753 = vadd.f32 %v368, %v695
        %v754 = vadd.f32 %v369, %v700
        %v755 = vadd.f32 %v370, %v703
        %v756 = vadd.f32 %v371, %v708
        %v757 = vadd.f32 %v372, %v711
        %v758 = vadd.f32 %v373, %v716
        %v759 = vadd.f32 %v374, %v719
        %v760 = vadd.f32 %v375, %v724
        %v761 = vadd.f32 %v376, %v727
        %vm762 = vcmask 261120
        %763 = vst.msk [vmem:[#allocation2] sm:$0xff] %vm762, %v730
        %764 = vst.msk [vmem:[#allocation2 + $0x8] sm:$0xff] %vm762, %v731
        %765 = vst.msk [vmem:[#allocation2 + $0x10] sm:$0xff] %vm762, %v732
        %766 = vst.msk [vmem:[#allocation2 + $0x18] sm:$0xff] %vm762, %v733
        %767 = vst.msk [vmem:[#allocation2 + $0x20] sm:$0xff] %vm762, %v734
        %768 = vst.msk [vmem:[#allocation2 + $0x28] sm:$0xff] %vm762, %v735
        %769 = vst.msk [vmem:[#allocation2 + $0x30] sm:$0xff] %vm762, %v736
        %770 = vst.msk [vmem:[#allocation2 + $0x38] sm:$0xff] %vm762, %v737
        %771 = vst.msk [vmem:[#allocation2 + $0x40] sm:$0xff] %vm762, %v738
        %772 = vst.msk [vmem:[#allocation2 + $0x48] sm:$0xff] %vm762, %v739
        %773 = vst.msk [vmem:[#allocation2 + $0x50] sm:$0xff] %vm762, %v740
        %774 = vst.msk [vmem:[#allocation2 + $0x58] sm:$0xff] %vm762, %v741
        %775 = vst.msk [vmem:[#allocation2 + $0x60] sm:$0xff] %vm762, %v742
        %776 = vst.msk [vmem:[#allocation2 + $0x68] sm:$0xff] %vm762, %v743
        %777 = vst.msk [vmem:[#allocation2 + $0x70] sm:$0xff] %vm762, %v744
        %778 = vst.msk [vmem:[#allocation2 + $0x78] sm:$0xff] %vm762, %v745
        %779 = vst.msk [vmem:[#allocation2 + $0x80] sm:$0xff] %vm762, %v746
        %780 = vst.msk [vmem:[#allocation2 + $0x88] sm:$0xff] %vm762, %v747
        %781 = vst.msk [vmem:[#allocation2 + $0x90] sm:$0xff] %vm762, %v748
        %782 = vst.msk [vmem:[#allocation2 + $0x98] sm:$0xff] %vm762, %v749
        %783 = vst.msk [vmem:[#allocation2 + $0xa0] sm:$0xff] %vm762, %v750
        %784 = vst.msk [vmem:[#allocation2 + $0xa8] sm:$0xff] %vm762, %v751
        %785 = vst.msk [vmem:[#allocation2 + $0xb0] sm:$0xff] %vm762, %v752
        %786 = vst.msk [vmem:[#allocation2 + $0xb8] sm:$0xff] %vm762, %v753
        %787 = vst.msk [vmem:[#allocation2 + $0xc0] sm:$0xff] %vm762, %v754
        %788 = vst.msk [vmem:[#allocation2 + $0xc8] sm:$0xff] %vm762, %v755
        %789 = vst.msk [vmem:[#allocation2 + $0xd0] sm:$0xff] %vm762, %v756
        %790 = vst.msk [vmem:[#allocation2 + $0xd8] sm:$0xff] %vm762, %v757
        %791 = vst.msk [vmem:[#allocation2 + $0xe0] sm:$0xff] %vm762, %v758
        %792 = vst.msk [vmem:[#allocation2 + $0xe8] sm:$0xff] %vm762, %v759
        %793 = vst.msk [vmem:[#allocation2 + $0xf0] sm:$0xff] %vm762, %v760
        %794 = vst.msk [vmem:[#allocation2 + $0xf8] sm:$0xff] %vm762, %v761
        %p795 = scmp.eq.s32.totalorder %s24, 3
        // Predicated region
        $region49: #{tpu_custom_call.1} parent=39 // pred_check
          %p796 = pneg %p795
        $region50: #{tpu_custom_call.1} parent=39 // pred_check_branch
          %798 = sbr.rel (%p796) target = $region52
        $region51: #{tpu_custom_call.1} parent=39 // pred_region
          %v799 = vld [vmem:[#allocation2] sm:$0xff]
          %v800 = vld [vmem:[#allocation2 + $0x8] sm:$0xff]
          %v801 = vld [vmem:[#allocation2 + $0x10] sm:$0xff]
          %v802 = vld [vmem:[#allocation2 + $0x18] sm:$0xff]
          %v803 = vld [vmem:[#allocation2 + $0x20] sm:$0xff]
          %v804 = vld [vmem:[#allocation2 + $0x28] sm:$0xff]
          %v805 = vld [vmem:[#allocation2 + $0x30] sm:$0xff]
          %v806 = vld [vmem:[#allocation2 + $0x38] sm:$0xff]
          %v807 = vld [vmem:[#allocation2 + $0x40] sm:$0xff]
          %v808 = vld [vmem:[#allocation2 + $0x48] sm:$0xff]
          %v809 = vld [vmem:[#allocation2 + $0x50] sm:$0xff]
          %v810 = vld [vmem:[#allocation2 + $0x58] sm:$0xff]
          %v811 = vld [vmem:[#allocation2 + $0x60] sm:$0xff]
          %v812 = vld [vmem:[#allocation2 + $0x68] sm:$0xff]
          %v813 = vld [vmem:[#allocation2 + $0x70] sm:$0xff]
          %v814 = vld [vmem:[#allocation2 + $0x78] sm:$0xff]
          %v815 = vld [vmem:[#allocation2 + $0x80] sm:$0xff]
          %v816 = vld [vmem:[#allocation2 + $0x88] sm:$0xff]
          %v817 = vld [vmem:[#allocation2 + $0x90] sm:$0xff]
          %v818 = vld [vmem:[#allocation2 + $0x98] sm:$0xff]
          %v819 = vld [vmem:[#allocation2 + $0xa0] sm:$0xff]
          %v820 = vld [vmem:[#allocation2 + $0xa8] sm:$0xff]
          %v821 = vld [vmem:[#allocation2 + $0xb0] sm:$0xff]
          %v822 = vld [vmem:[#allocation2 + $0xb8] sm:$0xff]
          %v823 = vld [vmem:[#allocation2 + $0xc0] sm:$0xff]
          %v824 = vld [vmem:[#allocation2 + $0xc8] sm:$0xff]
          %v825 = vld [vmem:[#allocation2 + $0xd0] sm:$0xff]
          %v826 = vld [vmem:[#allocation2 + $0xd8] sm:$0xff]
          %v827 = vld [vmem:[#allocation2 + $0xe0] sm:$0xff]
          %v828 = vld [vmem:[#allocation2 + $0xe8] sm:$0xff]
          %v829 = vld [vmem:[#allocation2 + $0xf0] sm:$0xff]
          %v830 = vld [vmem:[#allocation2 + $0xf8] sm:$0xff]
          %v831 = vld [vmem:[%s299] sm:$0xf]
          %v832 = vld [vmem:[%s299 + $0x4] sm:$0xf]
          %v833 = vld [vmem:[%s299 + $0x8] sm:$0xf]
          %v834 = vld [vmem:[%s299 + $0xc] sm:$0xf]
          %v835 = vld [vmem:[%s299 + $0x10] sm:$0xf]
          %v836 = vld [vmem:[%s299 + $0x14] sm:$0xf]
          %v837 = vld [vmem:[%s299 + $0x18] sm:$0xf]
          %v838 = vld [vmem:[%s299 + $0x1c] sm:$0xf]
          %v839 = vld [vmem:[%s299 + $0x20] sm:$0xf]
          %v840 = vld [vmem:[%s299 + $0x24] sm:$0xf]
          %v841 = vld [vmem:[%s299 + $0x28] sm:$0xf]
          %v842 = vld [vmem:[%s299 + $0x2c] sm:$0xf]
          %v843 = vld [vmem:[%s299 + $0x30] sm:$0xf]
          %v844 = vld [vmem:[%s299 + $0x34] sm:$0xf]
          %v845 = vld [vmem:[%s299 + $0x38] sm:$0xf]
          %v846 = vld [vmem:[%s299 + $0x3c] sm:$0xf]
          %v847 = vld [vmem:[%s299 + $0x40] sm:$0xf]
          %v848 = vld [vmem:[%s299 + $0x44] sm:$0xf]
          %v849 = vld [vmem:[%s299 + $0x48] sm:$0xf]
          %v850 = vld [vmem:[%s299 + $0x4c] sm:$0xf]
          %v851 = vld [vmem:[%s299 + $0x50] sm:$0xf]
          %v852 = vld [vmem:[%s299 + $0x54] sm:$0xf]
          %v853 = vld [vmem:[%s299 + $0x58] sm:$0xf]
          %v854 = vld [vmem:[%s299 + $0x5c] sm:$0xf]
          %v855 = vld [vmem:[%s299 + $0x60] sm:$0xf]
          %v856 = vld [vmem:[%s299 + $0x64] sm:$0xf]
          %v857 = vld [vmem:[%s299 + $0x68] sm:$0xf]
          %v858 = vld [vmem:[%s299 + $0x6c] sm:$0xf]
          %v859 = vld [vmem:[%s299 + $0x70] sm:$0xf]
          %v860 = vld [vmem:[%s299 + $0x74] sm:$0xf]
          %v861 = vld [vmem:[%s299 + $0x78] sm:$0xf]
          %v862 = vld [vmem:[%s299 + $0x7c] sm:$0xf]
          %v863 = vunpack.c.l.bf16 %v831
          %v864 = vunpack.c.l.bf16 %v832
          %v865 = vunpack.c.l.bf16 %v833
          %v866 = vunpack.c.l.bf16 %v834
          %v867 = vunpack.c.l.bf16 %v835
          %v868 = vunpack.c.l.bf16 %v836
          %v869 = vunpack.c.l.bf16 %v837
          %v870 = vunpack.c.l.bf16 %v838
          %v871 = vunpack.c.l.bf16 %v839
          %v872 = vunpack.c.l.bf16 %v840
          %v873 = vunpack.c.l.bf16 %v841
          %v874 = vunpack.c.l.bf16 %v842
          %v875 = vunpack.c.l.bf16 %v843
          %v876 = vunpack.c.l.bf16 %v844
          %v877 = vunpack.c.l.bf16 %v845
          %v878 = vunpack.c.l.bf16 %v846
          %v879 = vunpack.c.l.bf16 %v847
          %v880 = vunpack.c.l.bf16 %v848
          %v881 = vunpack.c.l.bf16 %v849
          %v882 = vunpack.c.l.bf16 %v850
          %v883 = vunpack.c.l.bf16 %v851
          %v884 = vunpack.c.l.bf16 %v852
          %v885 = vunpack.c.l.bf16 %v853
          %v886 = vunpack.c.l.bf16 %v854
          %v887 = vunpack.c.l.bf16 %v855
          %v888 = vunpack.c.l.bf16 %v856
          %v889 = vunpack.c.l.bf16 %v857
          %v890 = vunpack.c.l.bf16 %v858
          %v891 = vunpack.c.l.bf16 %v859
          %v892 = vunpack.c.l.bf16 %v860
          %v893 = vunpack.c.l.bf16 %v861
          %v894 = vunpack.c.l.bf16 %v862
          %v895 = vadd.f32 %v863, %v799
          %v896 = vadd.f32 %v864, %v800
          %v897 = vadd.f32 %v865, %v801
          %v898 = vadd.f32 %v866, %v802
          %v899 = vadd.f32 %v867, %v803
          %v900 = vadd.f32 %v868, %v804
          %v901 = vadd.f32 %v869, %v805
          %v902 = vadd.f32 %v870, %v806
          %v903 = vadd.f32 %v871, %v807
          %v904 = vadd.f32 %v872, %v808
          %v905 = vadd.f32 %v873, %v809
          %v906 = vadd.f32 %v874, %v810
          %v907 = vadd.f32 %v875, %v811
          %v908 = vadd.f32 %v876, %v812
          %v909 = vadd.f32 %v877, %v813
          %v910 = vadd.f32 %v878, %v814
          %v911 = vadd.f32 %v879, %v815
          %v912 = vadd.f32 %v880, %v816
          %v913 = vadd.f32 %v881, %v817
          %v914 = vadd.f32 %v882, %v818
          %v915 = vadd.f32 %v883, %v819
          %v916 = vadd.f32 %v884, %v820
          %v917 = vadd.f32 %v885, %v821
          %v918 = vadd.f32 %v886, %v822
          %v919 = vadd.f32 %v887, %v823
          %v920 = vadd.f32 %v888, %v824
          %v921 = vadd.f32 %v889, %v825
          %v922 = vadd.f32 %v890, %v826
          %v923 = vadd.f32 %v891, %v827
          %v924 = vadd.f32 %v892, %v828
          %v925 = vadd.f32 %v893, %v829
          %v926 = vadd.f32 %v894, %v830
          %v927 = vmul.f32 %v863, %v799
          %v928 = vmul.f32 %v864, %v800
          %v929 = vmul.f32 %v865, %v801
          %v930 = vmul.f32 %v866, %v802
          %v931 = vmul.f32 %v867, %v803
          %v932 = vmul.f32 %v868, %v804
          %v933 = vmul.f32 %v869, %v805
          %v934 = vmul.f32 %v870, %v806
          %v935 = vmul.f32 %v871, %v807
          %v936 = vmul.f32 %v872, %v808
          %v937 = vmul.f32 %v873, %v809
          %v938 = vmul.f32 %v874, %v810
          %v939 = vmul.f32 %v875, %v811
          %v940 = vmul.f32 %v876, %v812
          %v941 = vmul.f32 %v877, %v813
          %v942 = vmul.f32 %v878, %v814
          %v943 = vmul.f32 %v879, %v815
          %v944 = vmul.f32 %v880, %v816
          %v945 = vmul.f32 %v881, %v817
          %v946 = vmul.f32 %v882, %v818
          %v947 = vmul.f32 %v883, %v819
          %v948 = vmul.f32 %v884, %v820
          %v949 = vmul.f32 %v885, %v821
          %v950 = vmul.f32 %v886, %v822
          %v951 = vmul.f32 %v887, %v823
          %v952 = vmul.f32 %v888, %v824
          %v953 = vmul.f32 %v889, %v825
          %v954 = vmul.f32 %v890, %v826
          %v955 = vmul.f32 %v891, %v827
          %v956 = vmul.f32 %v892, %v828
          %v957 = vmul.f32 %v893, %v829
          %v958 = vmul.f32 %v894, %v830
          %991 = vrot.lane.b32.xlu0 %v927, 32
          %v992 = vpop.permute.xlu0 %991
          %993 = vrot.lane.b32.xlu0 %v928, 32
          %v994 = vpop.permute.xlu0 %993
          %995 = vrot.lane.b32.xlu0 %v929, 32
          %v996 = vpop.permute.xlu0 %995
          %997 = vrot.lane.b32.xlu0 %v930, 32
          %v998 = vpop.permute.xlu0 %997
          %999 = vrot.lane.b32.xlu0 %v931, 32
          %v1000 = vpop.permute.xlu0 %999
          %1001 = vrot.lane.b32.xlu0 %v932, 32
          %v1002 = vpop.permute.xlu0 %1001
          %1003 = vrot.lane.b32.xlu0 %v933, 32
          %v1004 = vpop.permute.xlu0 %1003
          %1005 = vrot.lane.b32.xlu0 %v934, 32
          %v1006 = vpop.permute.xlu0 %1005
          %1007 = vrot.lane.b32.xlu0 %v935, 32
          %v1008 = vpop.permute.xlu0 %1007
          %1009 = vrot.lane.b32.xlu0 %v936, 32
          %v1010 = vpop.permute.xlu0 %1009
          %1011 = vrot.lane.b32.xlu0 %v937, 32
          %v1012 = vpop.permute.xlu0 %1011
          %1013 = vrot.lane.b32.xlu0 %v938, 32
          %v1014 = vpop.permute.xlu0 %1013
          %1015 = vrot.lane.b32.xlu0 %v939, 32
          %v1016 = vpop.permute.xlu0 %1015
          %1017 = vrot.lane.b32.xlu0 %v940, 32
          %v1018 = vpop.permute.xlu0 %1017
          %1019 = vrot.lane.b32.xlu0 %v941, 32
          %v1020 = vpop.permute.xlu0 %1019
          %1021 = vrot.lane.b32.xlu0 %v942, 32
          %v1022 = vpop.permute.xlu0 %1021
          %1023 = vrot.lane.b32.xlu0 %v943, 32
          %v1024 = vpop.permute.xlu0 %1023
          %1025 = vrot.lane.b32.xlu0 %v944, 32
          %v1026 = vpop.permute.xlu0 %1025
          %1027 = vrot.lane.b32.xlu0 %v945, 32
          %v1028 = vpop.permute.xlu0 %1027
          %1029 = vrot.lane.b32.xlu0 %v946, 32
          %v1030 = vpop.permute.xlu0 %1029
          %1031 = vrot.lane.b32.xlu0 %v947, 32
          %v1032 = vpop.permute.xlu0 %1031
          %1033 = vrot.lane.b32.xlu0 %v948, 32
          %v1034 = vpop.permute.xlu0 %1033
          %1035 = vrot.lane.b32.xlu0 %v949, 32
          %v1036 = vpop.permute.xlu0 %1035
          %1037 = vrot.lane.b32.xlu0 %v950, 32
          %v1038 = vpop.permute.xlu0 %1037
          %1039 = vrot.lane.b32.xlu0 %v951, 32
          %v1040 = vpop.permute.xlu0 %1039
          %1041 = vrot.lane.b32.xlu0 %v952, 32
          %v1042 = vpop.permute.xlu0 %1041
          %1043 = vrot.lane.b32.xlu0 %v953, 32
          %v1044 = vpop.permute.xlu0 %1043
          %1045 = vrot.lane.b32.xlu0 %v954, 32
          %v1046 = vpop.permute.xlu0 %1045
          %1047 = vrot.lane.b32.xlu0 %v955, 32
          %v1048 = vpop.permute.xlu0 %1047
          %1049 = vrot.lane.b32.xlu0 %v956, 32
          %v1050 = vpop.permute.xlu0 %1049
          %1051 = vrot.lane.b32.xlu0 %v957, 32
          %v1052 = vpop.permute.xlu0 %1051
          %1053 = vrot.lane.b32.xlu0 %v958, 32
          %v1054 = vpop.permute.xlu0 %1053
          %v1087 = vsel %vm762, %v895, %v992
          %v1088 = vsel %vm762, %v896, %v994
          %v1089 = vsel %vm762, %v897, %v996
          %v1090 = vsel %vm762, %v898, %v998
          %v1091 = vsel %vm762, %v899, %v1000
          %v1092 = vsel %vm762, %v900, %v1002
          %v1093 = vsel %vm762, %v901, %v1004
          %v1094 = vsel %vm762, %v902, %v1006
          %v1095 = vsel %vm762, %v903, %v1008
          %v1096 = vsel %vm762, %v904, %v1010
          %v1097 = vsel %vm762, %v905, %v1012
          %v1098 = vsel %vm762, %v906, %v1014
          %v1099 = vsel %vm762, %v907, %v1016
          %v1100 = vsel %vm762, %v908, %v1018
          %v1101 = vsel %vm762, %v909, %v1020
          %v1102 = vsel %vm762, %v910, %v1022
          %v1103 = vsel %vm762, %v911, %v1024
          %v1104 = vsel %vm762, %v912, %v1026
          %v1105 = vsel %vm762, %v913, %v1028
          %v1106 = vsel %vm762, %v914, %v1030
          %v1107 = vsel %vm762, %v915, %v1032
          %v1108 = vsel %vm762, %v916, %v1034
          %v1109 = vsel %vm762, %v917, %v1036
          %v1110 = vsel %vm762, %v918, %v1038
          %v1111 = vsel %vm762, %v919, %v1040
          %v1112 = vsel %vm762, %v920, %v1042
          %v1113 = vsel %vm762, %v921, %v1044
          %v1114 = vsel %vm762, %v922, %v1046
          %v1115 = vsel %vm762, %v923, %v1048
          %v1116 = vsel %vm762, %v924, %v1050
          %v1117 = vsel %vm762, %v925, %v1052
          %v1118 = vsel %vm762, %v926, %v1054
          %v1119 = vpack.c.bf16 %v1088, %v1087
          %v1120 = vpack.c.bf16 %v1090, %v1089
          %v1121 = vpack.c.bf16 %v1092, %v1091
          %v1122 = vpack.c.bf16 %v1094, %v1093
          %v1123 = vpack.c.bf16 %v1096, %v1095
          %v1124 = vpack.c.bf16 %v1098, %v1097
          %v1125 = vpack.c.bf16 %v1100, %v1099
          %v1126 = vpack.c.bf16 %v1102, %v1101
          %v1127 = vpack.c.bf16 %v1104, %v1103
          %v1128 = vpack.c.bf16 %v1106, %v1105
          %v1129 = vpack.c.bf16 %v1108, %v1107
          %v1130 = vpack.c.bf16 %v1110, %v1109
          %v1131 = vpack.c.bf16 %v1112, %v1111
          %v1132 = vpack.c.bf16 %v1114, %v1113
          %v1133 = vpack.c.bf16 %v1116, %v1115
          %v1134 = vpack.c.bf16 %v1118, %v1117
          %v1135 = vld [vmem:[%s3] sm:$0xf]
          %v1136 = vld [vmem:[%s3 + $0x4] sm:$0xf]
          %v1137 = vld [vmem:[%s3 + $0x8] sm:$0xf]
          %v1138 = vld [vmem:[%s3 + $0xc] sm:$0xf]
          %v1139 = vld [vmem:[%s3 + $0x10] sm:$0xf]
          %v1140 = vld [vmem:[%s3 + $0x14] sm:$0xf]
          %v1141 = vld [vmem:[%s3 + $0x18] sm:$0xf]
          %v1142 = vld [vmem:[%s3 + $0x1c] sm:$0xf]
          %v1143 = vld [vmem:[%s4] sm:$0x1]
          %v1145 = vlaneseq
          %v1146 = vshrl.u32 %v1145, 7
          %v1147 = vsub.s32 0, %v1146
          %v1148 = vrot.slane %v1143, %v1147
          %v1158 = vunpack.c.l.b16 %v1135
          %v1159 = vunpack.c.l.b16 %v1136
          %v1160 = vunpack.c.l.b16 %v1137
          %v1161 = vunpack.c.l.b16 %v1138
          %v1162 = vunpack.c.l.b16 %v1139
          %v1163 = vunpack.c.l.b16 %v1140
          %v1164 = vunpack.c.l.b16 %v1141
          %v1165 = vunpack.c.l.b16 %v1142
          %v1166 = vpack.c.b16 %v1159, %v1158
          %v1167 = vpack.c.b16 %v1161, %v1160
          %v1168 = vpack.c.b16 %v1163, %v1162
          %v1169 = vpack.c.b16 %v1165, %v1164
          %vm1174 = vcmask 523264
          %v1176 = vsel %vm1174, %v1119, 0
          %v1179 = vsel %vm1174, %v1120, 0
          %v1182 = vsel %vm1174, %v1121, 0
          %v1185 = vsel %vm1174, %v1122, 0
          %v1188 = vsel %vm1174, %v1123, 0
          %v1191 = vsel %vm1174, %v1124, 0
          %v1194 = vsel %vm1174, %v1125, 0
          %v1197 = vsel %vm1174, %v1126, 0
          %v1200 = vsel %vm1174, %v1127, 0
          %v1203 = vsel %vm1174, %v1128, 0
          %v1206 = vsel %vm1174, %v1129, 0
          %v1209 = vsel %vm1174, %v1130, 0
          %v1212 = vsel %vm1174, %v1131, 0
          %v1215 = vsel %vm1174, %v1132, 0
          %v1218 = vsel %vm1174, %v1133, 0
          %v1221 = vsel %vm1174, %v1134, 0
          %1223 = vmatprep.subr.bf16.mxu0 0
          %1224 = vmatpush1.bf16.msra.mxu0 %v1166
          %1225 = vmatprep.subr.bf16.mxu0 0
          %1226 = vmatpush1.bf16.msra.mxu0 %v1167
          %1227 = vmatprep.subr.bf16.mxu0 0
          %1228 = vmatpush1.bf16.msra.mxu0 %v1168
          %1229 = vmatprep.subr.bf16.mxu0 0
          %1230 = vmatpush1.bf16.msra.mxu0 %v1169
          %1231 = vmatprep.subr.bf16.mxu0 0
          %1232 = vmatpush1.bf16.msra.mxu0 0
          %1233 = vmatprep.subr.bf16.mxu0 0
          %1234 = vmatpush1.bf16.msra.mxu0 0
          %1235 = vmatprep.subr.bf16.mxu0 0
          %1236 = vmatpush1.bf16.msra.mxu0 0
          %1237 = vmatprep.subr.bf16.mxu0 0
          %1238 = vmatpush1.bf16.msra.mxu0 0
          %1239 = vmatprep.subr.bf16.mxu0 0
          %1240 = vmatpush1.bf16.msra.mxu0 0
          %1241 = vmatprep.subr.bf16.mxu0 0
          %1242 = vmatpush1.bf16.msra.mxu0 0
          %1243 = vmatprep.subr.bf16.mxu0 0
          %1244 = vmatpush1.bf16.msra.mxu0 0
          %1245 = vmatprep.subr.bf16.mxu0 0
          %1246 = vmatpush1.bf16.msra.mxu0 0
          %1247 = vmatprep.subr.bf16.mxu0 0
          %1248 = vmatpush1.bf16.msra.mxu0 0
          %1249 = vmatprep.subr.bf16.mxu0 0
          %1250 = vmatpush1.bf16.msra.mxu0 0
          %1251 = vmatprep.subr.bf16.mxu0 0
          %1252 = vmatpush1.bf16.msra.mxu0 0
          %1253 = vmatprep.subr.bf16.mxu0 0
          %1254 = vmatpush1.bf16.msra.mxu0 0
          %1255 = vmatprep.mubr.bf16.mxu0 0
          %1256 = vmatmul.mubr.bf16.gmra.mrb[0].mxu0 %v1176
          %v1257 = vpop.f32.mrb[0].mxu0
          %v1258 = vadd.f32 %v1148, %v1257
          %v1259 = vpop.f32.mrb[0].mxu0
          %v1260 = vpop.f32.mrb[0].mxu0
          %v1261 = vadd.f32 %v1148, %v1260
          %v1262 = vpop.f32.mrb[0].mxu0
          %1263 = vmatprep.mubr.bf16.mxu0 0
          %1264 = vmatmul.mubr.bf16.gmra.mrb[0].mxu0 %v1179
          %v1265 = vpop.f32.mrb[0].mxu0
          %v1266 = vadd.f32 %v1148, %v1265
          %v1267 = vpop.f32.mrb[0].mxu0
          %v1268 = vpop.f32.mrb[0].mxu0
          %v1269 = vadd.f32 %v1148, %v1268
          %v1270 = vpop.f32.mrb[0].mxu0
          %1271 = vmatprep.mubr.bf16.mxu0 0
          %1272 = vmatmul.mubr.bf16.gmra.mrb[0].mxu0 %v1182
          %v1273 = vpop.f32.mrb[0].mxu0
          %v1274 = vadd.f32 %v1148, %v1273
          %v1275 = vpop.f32.mrb[0].mxu0
          %v1276 = vpop.f32.mrb[0].mxu0
          %v1277 = vadd.f32 %v1148, %v1276
          %v1278 = vpop.f32.mrb[0].mxu0
          %1279 = vmatprep.mubr.bf16.mxu0 0
          %1280 = vmatmul.mubr.bf16.gmra.mrb[0].mxu0 %v1185
          %v1281 = vpop.f32.mrb[0].mxu0
          %v1282 = vadd.f32 %v1148, %v1281
          %v1283 = vpop.f32.mrb[0].mxu0
          %v1284 = vpop.f32.mrb[0].mxu0
          %v1285 = vadd.f32 %v1148, %v1284
          %v1286 = vpop.f32.mrb[0].mxu0
          %1287 = vmatprep.mubr.bf16.mxu0 0
          %1288 = vmatmul.mubr.bf16.gmra.mrb[0].mxu0 %v1188
          %v1289 = vpop.f32.mrb[0].mxu0
          %v1290 = vadd.f32 %v1148, %v1289
          %v1291 = vpop.f32.mrb[0].mxu0
          %v1292 = vpop.f32.mrb[0].mxu0
          %v1293 = vadd.f32 %v1148, %v1292
          %v1294 = vpop.f32.mrb[0].mxu0
          %1295 = vmatprep.mubr.bf16.mxu0 0
          %1296 = vmatmul.mubr.bf16.gmra.mrb[0].mxu0 %v1191
          %v1297 = vpop.f32.mrb[0].mxu0
          %v1298 = vadd.f32 %v1148, %v1297
          %v1299 = vpop.f32.mrb[0].mxu0
          %v1300 = vpop.f32.mrb[0].mxu0
          %v1301 = vadd.f32 %v1148, %v1300
          %v1302 = vpop.f32.mrb[0].mxu0
          %1303 = vmatprep.mubr.bf16.mxu0 0
          %1304 = vmatmul.mubr.bf16.gmra.mrb[0].mxu0 %v1194
          %v1305 = vpop.f32.mrb[0].mxu0
          %v1306 = vadd.f32 %v1148, %v1305
          %v1307 = vpop.f32.mrb[0].mxu0
          %v1308 = vpop.f32.mrb[0].mxu0
          %v1309 = vadd.f32 %v1148, %v1308
          %v1310 = vpop.f32.mrb[0].mxu0
          %1311 = vmatprep.mubr.bf16.mxu0 0
          %1312 = vmatmul.mubr.bf16.gmra.mrb[0].mxu0 %v1197
          %v1313 = vpop.f32.mrb[0].mxu0
          %v1314 = vadd.f32 %v1148, %v1313
          %v1315 = vpop.f32.mrb[0].mxu0
          %v1316 = vpop.f32.mrb[0].mxu0
          %v1317 = vadd.f32 %v1148, %v1316
          %v1318 = vpop.f32.mrb[0].mxu0
          %1319 = vmatprep.mubr.bf16.mxu0 0
          %1320 = vmatmul.mubr.bf16.gmra.mrb[0].mxu0 %v1200
          %v1321 = vpop.f32.mrb[0].mxu0
          %v1322 = vadd.f32 %v1148, %v1321
          %v1323 = vpop.f32.mrb[0].mxu0
          %v1324 = vpop.f32.mrb[0].mxu0
          %v1325 = vadd.f32 %v1148, %v1324
          %v1326 = vpop.f32.mrb[0].mxu0
          %1327 = vmatprep.mubr.bf16.mxu0 0
          %1328 = vmatmul.mubr.bf16.gmra.mrb[0].mxu0 %v1203
          %v1329 = vpop.f32.mrb[0].mxu0
          %v1330 = vadd.f32 %v1148, %v1329
          %v1331 = vpop.f32.mrb[0].mxu0
          %v1332 = vpop.f32.mrb[0].mxu0
          %v1333 = vadd.f32 %v1148, %v1332
          %v1334 = vpop.f32.mrb[0].mxu0
          %1335 = vmatprep.mubr.bf16.mxu0 0
          %1336 = vmatmul.mubr.bf16.gmra.mrb[0].mxu0 %v1206
          %v1337 = vpop.f32.mrb[0].mxu0
          %v1338 = vadd.f32 %v1148, %v1337
          %v1339 = vpop.f32.mrb[0].mxu0
          %v1340 = vpop.f32.mrb[0].mxu0
          %v1341 = vadd.f32 %v1148, %v1340
          %v1342 = vpop.f32.mrb[0].mxu0
          %1343 = vmatprep.mubr.bf16.mxu0 0
          %1344 = vmatmul.mubr.bf16.gmra.mrb[0].mxu0 %v1209
          %v1345 = vpop.f32.mrb[0].mxu0
          %v1346 = vadd.f32 %v1148, %v1345
          %v1347 = vpop.f32.mrb[0].mxu0
          %v1348 = vpop.f32.mrb[0].mxu0
          %v1349 = vadd.f32 %v1148, %v1348
          %v1350 = vpop.f32.mrb[0].mxu0
          %1351 = vmatprep.mubr.bf16.mxu0 0
          %1352 = vmatmul.mubr.bf16.gmra.mrb[0].mxu0 %v1212
          %v1353 = vpop.f32.mrb[0].mxu0
          %v1354 = vadd.f32 %v1148, %v1353
          %v1355 = vpop.f32.mrb[0].mxu0
          %v1356 = vpop.f32.mrb[0].mxu0
          %v1357 = vadd.f32 %v1148, %v1356
          %v1358 = vpop.f32.mrb[0].mxu0
          %1359 = vmatprep.mubr.bf16.mxu0 0
          %1360 = vmatmul.mubr.bf16.gmra.mrb[0].mxu0 %v1215
          %v1361 = vpop.f32.mrb[0].mxu0
          %v1362 = vadd.f32 %v1148, %v1361
          %v1363 = vpop.f32.mrb[0].mxu0
          %v1364 = vpop.f32.mrb[0].mxu0
          %v1365 = vadd.f32 %v1148, %v1364
          %v1366 = vpop.f32.mrb[0].mxu0
          %1367 = vmatprep.mubr.bf16.mxu0 0
          %1368 = vmatmul.mubr.bf16.gmra.mrb[0].mxu0 %v1218
          %v1369 = vpop.f32.mrb[0].mxu0
          %v1370 = vadd.f32 %v1148, %v1369
          %v1371 = vpop.f32.mrb[0].mxu0
          %v1372 = vpop.f32.mrb[0].mxu0
          %v1373 = vadd.f32 %v1148, %v1372
          %v1374 = vpop.f32.mrb[0].mxu0
          %1375 = vmatprep.mubr.bf16.mxu0 0
          %1376 = vmatmul.mubr.bf16.gmra.mrb[0].mxu0 %v1221
          %v1377 = vpop.f32.mrb[0].mxu0
          %v1378 = vadd.f32 %v1148, %v1377
          %v1379 = vpop.f32.mrb[0].mxu0
          %v1380 = vpop.f32.mrb[0].mxu0
          %v1381 = vadd.f32 %v1148, %v1380
          %v1382 = vpop.f32.mrb[0].mxu0
          %1383 = vdwg.mxu0
          %vm1384 = vcmp.ge.f32.partialorder %v1258, 0.0
          %vm1385 = vcmp.ge.f32.partialorder %v1261, 0.0
          %vm1386 = vcmp.ge.f32.partialorder %v1266, 0.0
          %vm1387 = vcmp.ge.f32.partialorder %v1269, 0.0
          %vm1388 = vcmp.ge.f32.partialorder %v1274, 0.0
          %vm1389 = vcmp.ge.f32.partialorder %v1277, 0.0
          %vm1390 = vcmp.ge.f32.partialorder %v1282, 0.0
          %vm1391 = vcmp.ge.f32.partialorder %v1285, 0.0
          %vm1392 = vcmp.ge.f32.partialorder %v1290, 0.0
          %vm1393 = vcmp.ge.f32.partialorder %v1293, 0.0
          %vm1394 = vcmp.ge.f32.partialorder %v1298, 0.0
          %vm1395 = vcmp.ge.f32.partialorder %v1301, 0.0
          %vm1396 = vcmp.ge.f32.partialorder %v1306, 0.0
          %vm1397 = vcmp.ge.f32.partialorder %v1309, 0.0
          %vm1398 = vcmp.ge.f32.partialorder %v1314, 0.0
          %vm1399 = vcmp.ge.f32.partialorder %v1317, 0.0
          %vm1400 = vcmp.ge.f32.partialorder %v1322, 0.0
          %vm1401 = vcmp.ge.f32.partialorder %v1325, 0.0
          %vm1402 = vcmp.ge.f32.partialorder %v1330, 0.0
          %vm1403 = vcmp.ge.f32.partialorder %v1333, 0.0
          %vm1404 = vcmp.ge.f32.partialorder %v1338, 0.0
          %vm1405 = vcmp.ge.f32.partialorder %v1341, 0.0
          %vm1406 = vcmp.ge.f32.partialorder %v1346, 0.0
          %vm1407 = vcmp.ge.f32.partialorder %v1349, 0.0
          %vm1408 = vcmp.ge.f32.partialorder %v1354, 0.0
          %vm1409 = vcmp.ge.f32.partialorder %v1357, 0.0
          %vm1410 = vcmp.ge.f32.partialorder %v1362, 0.0
          %vm1411 = vcmp.ge.f32.partialorder %v1365, 0.0
          %vm1412 = vcmp.ge.f32.partialorder %v1370, 0.0
          %vm1413 = vcmp.ge.f32.partialorder %v1373, 0.0
          %vm1414 = vcmp.ge.f32.partialorder %v1378, 0.0
          %vm1415 = vcmp.ge.f32.partialorder %v1381, 0.0
          %v1416 = vmul.f32 %v1258, 0.01
          %v1417 = vmul.f32 %v1261, 0.01
          %v1418 = vmul.f32 %v1266, 0.01
          %v1419 = vmul.f32 %v1269, 0.01
          %v1420 = vmul.f32 %v1274, 0.01
          %v1421 = vmul.f32 %v1277, 0.01
          %v1422 = vmul.f32 %v1282, 0.01
          %v1423 = vmul.f32 %v1285, 0.01
          %v1424 = vmul.f32 %v1290, 0.01
          %v1425 = vmul.f32 %v1293, 0.01
          %v1426 = vmul.f32 %v1298, 0.01
          %v1427 = vmul.f32 %v1301, 0.01
          %v1428 = vmul.f32 %v1306, 0.01
          %v1429 = vmul.f32 %v1309, 0.01
          %v1430 = vmul.f32 %v1314, 0.01
          %v1431 = vmul.f32 %v1317, 0.01
          %v1432 = vmul.f32 %v1322, 0.01
          %v1433 = vmul.f32 %v1325, 0.01
          %v1434 = vmul.f32 %v1330, 0.01
          %v1435 = vmul.f32 %v1333, 0.01
          %v1436 = vmul.f32 %v1338, 0.01
          %v1437 = vmul.f32 %v1341, 0.01
          %v1438 = vmul.f32 %v1346, 0.01
          %v1439 = vmul.f32 %v1349, 0.01
          %v1440 = vmul.f32 %v1354, 0.01
          %v1441 = vmul.f32 %v1357, 0.01
          %v1442 = vmul.f32 %v1362, 0.01
          %v1443 = vmul.f32 %v1365, 0.01
          %v1444 = vmul.f32 %v1370, 0.01
          %v1445 = vmul.f32 %v1373, 0.01
          %v1446 = vmul.f32 %v1378, 0.01
          %v1447 = vmul.f32 %v1381, 0.01
          %v1448 = vsel %vm1384, %v1258, %v1416
          %v1449 = vsel %vm1385, %v1261, %v1417
          %v1450 = vsel %vm1386, %v1266, %v1418
          %v1451 = vsel %vm1387, %v1269, %v1419
          %v1452 = vsel %vm1388, %v1274, %v1420
          %v1453 = vsel %vm1389, %v1277, %v1421
          %v1454 = vsel %vm1390, %v1282, %v1422
          %v1455 = vsel %vm1391, %v1285, %v1423
          %v1456 = vsel %vm1392, %v1290, %v1424
          %v1457 = vsel %vm1393, %v1293, %v1425
          %v1458 = vsel %vm1394, %v1298, %v1426
          %v1459 = vsel %vm1395, %v1301, %v1427
          %v1460 = vsel %vm1396, %v1306, %v1428
          %v1461 = vsel %vm1397, %v1309, %v1429
          %v1462 = vsel %vm1398, %v1314, %v1430
          %v1463 = vsel %vm1399, %v1317, %v1431
          %v1464 = vsel %vm1400, %v1322, %v1432
          %v1465 = vsel %vm1401, %v1325, %v1433
          %v1466 = vsel %vm1402, %v1330, %v1434
          %v1467 = vsel %vm1403, %v1333, %v1435
          %v1468 = vsel %vm1404, %v1338, %v1436
          %v1469 = vsel %vm1405, %v1341, %v1437
          %v1470 = vsel %vm1406, %v1346, %v1438
          %v1471 = vsel %vm1407, %v1349, %v1439
          %v1472 = vsel %vm1408, %v1354, %v1440
          %v1473 = vsel %vm1409, %v1357, %v1441
          %v1474 = vsel %vm1410, %v1362, %v1442
          %v1475 = vsel %vm1411, %v1365, %v1443
          %v1476 = vsel %vm1412, %v1370, %v1444
          %v1477 = vsel %vm1413, %v1373, %v1445
          %v1478 = vsel %vm1414, %v1378, %v1446
          %v1479 = vsel %vm1415, %v1381, %v1447
          %1512 = vrot.lane.b32.xlu0 %v1448, 96
          %v1513 = vpop.permute.xlu0 %1512
          %1514 = vrot.lane.b32.xlu0 %v1449, 96
          %v1515 = vpop.permute.xlu0 %1514
          %1516 = vrot.lane.b32.xlu0 %v1450, 96
          %v1517 = vpop.permute.xlu0 %1516
          %1518 = vrot.lane.b32.xlu0 %v1451, 96
          %v1519 = vpop.permute.xlu0 %1518
          %1520 = vrot.lane.b32.xlu0 %v1452, 96
          %v1521 = vpop.permute.xlu0 %1520
          %1522 = vrot.lane.b32.xlu0 %v1453, 96
          %v1523 = vpop.permute.xlu0 %1522
          %1524 = vrot.lane.b32.xlu0 %v1454, 96
          %v1525 = vpop.permute.xlu0 %1524
          %1526 = vrot.lane.b32.xlu0 %v1455, 96
          %v1527 = vpop.permute.xlu0 %1526
          %1528 = vrot.lane.b32.xlu0 %v1456, 96
          %v1529 = vpop.permute.xlu0 %1528
          %1530 = vrot.lane.b32.xlu0 %v1457, 96
          %v1531 = vpop.permute.xlu0 %1530
          %1532 = vrot.lane.b32.xlu0 %v1458, 96
          %v1533 = vpop.permute.xlu0 %1532
          %1534 = vrot.lane.b32.xlu0 %v1459, 96
          %v1535 = vpop.permute.xlu0 %1534
          %1536 = vrot.lane.b32.xlu0 %v1460, 96
          %v1537 = vpop.permute.xlu0 %1536
          %1538 = vrot.lane.b32.xlu0 %v1461, 96
          %v1539 = vpop.permute.xlu0 %1538
          %1540 = vrot.lane.b32.xlu0 %v1462, 96
          %v1541 = vpop.permute.xlu0 %1540
          %1542 = vrot.lane.b32.xlu0 %v1463, 96
          %v1543 = vpop.permute.xlu0 %1542
          %1544 = vrot.lane.b32.xlu0 %v1464, 96
          %v1545 = vpop.permute.xlu0 %1544
          %1546 = vrot.lane.b32.xlu0 %v1465, 96
          %v1547 = vpop.permute.xlu0 %1546
          %1548 = vrot.lane.b32.xlu0 %v1466, 96
          %v1549 = vpop.permute.xlu0 %1548
          %1550 = vrot.lane.b32.xlu0 %v1467, 96
          %v1551 = vpop.permute.xlu0 %1550
          %1552 = vrot.lane.b32.xlu0 %v1468, 96
          %v1553 = vpop.permute.xlu0 %1552
          %1554 = vrot.lane.b32.xlu0 %v1469, 96
          %v1555 = vpop.permute.xlu0 %1554
          %1556 = vrot.lane.b32.xlu0 %v1470, 96
          %v1557 = vpop.permute.xlu0 %1556
          %1558 = vrot.lane.b32.xlu0 %v1471, 96
          %v1559 = vpop.permute.xlu0 %1558
          %1560 = vrot.lane.b32.xlu0 %v1472, 96
          %v1561 = vpop.permute.xlu0 %1560
          %1562 = vrot.lane.b32.xlu0 %v1473, 96
          %v1563 = vpop.permute.xlu0 %1562
          %1564 = vrot.lane.b32.xlu0 %v1474, 96
          %v1565 = vpop.permute.xlu0 %1564
          %1566 = vrot.lane.b32.xlu0 %v1475, 96
          %v1567 = vpop.permute.xlu0 %1566
          %1568 = vrot.lane.b32.xlu0 %v1476, 96
          %v1569 = vpop.permute.xlu0 %1568
          %1570 = vrot.lane.b32.xlu0 %v1477, 96
          %v1571 = vpop.permute.xlu0 %1570
          %1572 = vrot.lane.b32.xlu0 %v1478, 96
          %v1573 = vpop.permute.xlu0 %1572
          %1574 = vrot.lane.b32.xlu0 %v1479, 96
          %v1575 = vpop.permute.xlu0 %1574
          %v1608 = vadd.f32 %v1448, %v1513
          %v1609 = vadd.f32 %v1449, %v1515
          %v1610 = vadd.f32 %v1450, %v1517
          %v1611 = vadd.f32 %v1451, %v1519
          %v1612 = vadd.f32 %v1452, %v1521
          %v1613 = vadd.f32 %v1453, %v1523
          %v1614 = vadd.f32 %v1454, %v1525
          %v1615 = vadd.f32 %v1455, %v1527
          %v1616 = vadd.f32 %v1456, %v1529
          %v1617 = vadd.f32 %v1457, %v1531
          %v1618 = vadd.f32 %v1458, %v1533
          %v1619 = vadd.f32 %v1459, %v1535
          %v1620 = vadd.f32 %v1460, %v1537
          %v1621 = vadd.f32 %v1461, %v1539
          %v1622 = vadd.f32 %v1462, %v1541
          %v1623 = vadd.f32 %v1463, %v1543
          %v1624 = vadd.f32 %v1464, %v1545
          %v1625 = vadd.f32 %v1465, %v1547
          %v1626 = vadd.f32 %v1466, %v1549
          %v1627 = vadd.f32 %v1467, %v1551
          %v1628 = vadd.f32 %v1468, %v1553
          %v1629 = vadd.f32 %v1469, %v1555
          %v1630 = vadd.f32 %v1470, %v1557
          %v1631 = vadd.f32 %v1471, %v1559
          %v1632 = vadd.f32 %v1472, %v1561
          %v1633 = vadd.f32 %v1473, %v1563
          %v1634 = vadd.f32 %v1474, %v1565
          %v1635 = vadd.f32 %v1475, %v1567
          %v1636 = vadd.f32 %v1476, %v1569
          %v1637 = vadd.f32 %v1477, %v1571
          %v1638 = vadd.f32 %v1478, %v1573
          %v1639 = vadd.f32 %v1479, %v1575
          %1640 = vst.msk [vmem:[%s305] sm:$0xff] %vm762, %v1608
          %1641 = vst.msk [vmem:[%s305 + $0x8] sm:$0xff] %vm762, %v1609
          %1642 = vst.msk [vmem:[%s305 + $0x10] sm:$0xff] %vm762, %v1610
          %1643 = vst.msk [vmem:[%s305 + $0x18] sm:$0xff] %vm762, %v1611
          %1644 = vst.msk [vmem:[%s305 + $0x20] sm:$0xff] %vm762, %v1612
          %1645 = vst.msk [vmem:[%s305 + $0x28] sm:$0xff] %vm762, %v1613
          %1646 = vst.msk [vmem:[%s305 + $0x30] sm:$0xff] %vm762, %v1614
          %1647 = vst.msk [vmem:[%s305 + $0x38] sm:$0xff] %vm762, %v1615
          %1648 = vst.msk [vmem:[%s305 + $0x40] sm:$0xff] %vm762, %v1616
          %1649 = vst.msk [vmem:[%s305 + $0x48] sm:$0xff] %vm762, %v1617
          %1650 = vst.msk [vmem:[%s305 + $0x50] sm:$0xff] %vm762, %v1618
          %1651 = vst.msk [vmem:[%s305 + $0x58] sm:$0xff] %vm762, %v1619
          %1652 = vst.msk [vmem:[%s305 + $0x60] sm:$0xff] %vm762, %v1620
          %1653 = vst.msk [vmem:[%s305 + $0x68] sm:$0xff] %vm762, %v1621
          %1654 = vst.msk [vmem:[%s305 + $0x70] sm:$0xff] %vm762, %v1622
          %1655 = vst.msk [vmem:[%s305 + $0x78] sm:$0xff] %vm762, %v1623
          %1656 = vst.msk [vmem:[%s305 + $0x80] sm:$0xff] %vm762, %v1624
          %1657 = vst.msk [vmem:[%s305 + $0x88] sm:$0xff] %vm762, %v1625
          %1658 = vst.msk [vmem:[%s305 + $0x90] sm:$0xff] %vm762, %v1626
          %1659 = vst.msk [vmem:[%s305 + $0x98] sm:$0xff] %vm762, %v1627
          %1660 = vst.msk [vmem:[%s305 + $0xa0] sm:$0xff] %vm762, %v1628
          %1661 = vst.msk [vmem:[%s305 + $0xa8] sm:$0xff] %vm762, %v1629
          %1662 = vst.msk [vmem:[%s305 + $0xb0] sm:$0xff] %vm762, %v1630
          %1663 = vst.msk [vmem:[%s305 + $0xb8] sm:$0xff] %vm762, %v1631
          %1664 = vst.msk [vmem:[%s305 + $0xc0] sm:$0xff] %vm762, %v1632
          %1665 = vst.msk [vmem:[%s305 + $0xc8] sm:$0xff] %vm762, %v1633
          %1666 = vst.msk [vmem:[%s305 + $0xd0] sm:$0xff] %vm762, %v1634
          %1667 = vst.msk [vmem:[%s305 + $0xd8] sm:$0xff] %vm762, %v1635
          %1668 = vst.msk [vmem:[%s305 + $0xe0] sm:$0xff] %vm762, %v1636
          %1669 = vst.msk [vmem:[%s305 + $0xe8] sm:$0xff] %vm762, %v1637
          %1670 = vst.msk [vmem:[%s305 + $0xf0] sm:$0xff] %vm762, %v1638
          %1671 = vst.msk [vmem:[%s305 + $0xf8] sm:$0xff] %vm762, %v1639
        $region52: #{tpu_custom_call.1} parent=39 // pred_fallthru
          _
        %s1672 = smul.u32 32, %s23
        %p1673 = scmp.lt.s32.totalorder %s1672, 63
        %s1674 = scalar_select %p1673, %s1672, 63
        %s1675 = smul.addr %s1674, 8
        %s1676 = scalar_lea.vmem %s5, %s1675
        // Predicated region
        $region53: #{tpu_custom_call.1} parent=39 // pred_check
          %p1677 = pneg %p171
        $region54: #{tpu_custom_call.1} parent=39 // pred_check_branch
          %1679 = sbr.rel (%p1677) target = $region56
        $region55: #{tpu_custom_call.1} parent=39 // pred_region
          %s1680 = smul.u32 32, %s23
        $region56: #{tpu_custom_call.1} parent=39 // pred_fallthru
          _
      $region40: #{tpu_custom_call.1} parent=5 // pred_fallthru
        _
      %p1681 = scmp.le.s32.totalorder 2, %s14
      // Predicated region
      $region57: #{tpu_custom_call.1} parent=5 // pred_check
        %p1682 = pneg %p1681
      $region58: #{tpu_custom_call.1} parent=5 // pred_check_branch
        %1684 = sbr.rel (%p1682) target = $region60
      $region59: #{tpu_custom_call.1} parent=5 // pred_region
        %s1685 = ssub.s32 %s14, 2
        // Predicated region
        $region61: #{tpu_custom_call.1} parent=59 // pred_check
          %p1686 = pneg %p177
        $region62: #{tpu_custom_call.1} parent=59 // pred_check_branch
          %1688 = sbr.rel (%p1686) target = $region64
        $region63: #{tpu_custom_call.1} parent=59 // pred_region
          %s1689 = smul.u32 32, %s25
          %p1690 = scmp.lt.s32.totalorder %s1689, 63
          %s1691 = scalar_select %p1690, %s1689, 63
          %s1692 = smul.addr %s1691, 8
          %s1693 = scalar_lea.vmem %s5, %s1692
        $region64: #{tpu_custom_call.1} parent=59 // pred_fallthru
          _
      $region60: #{tpu_custom_call.1} parent=5 // pred_fallthru
        _
    $region6: #{tpu_custom_call.1} parent=1 // loop_footer
      %s18 = sadd.s32 1, %s14
    $region7: #{tpu_custom_call.1} parent=1 // loop_footer_branch
      %13 = sbr.rel target = $region3
    $region8: #{tpu_custom_call.1} parent=1 // loop_exit
      _
    %1694 = vsyncpa [#allocation4], 1
    %s1695 = scalar_lea.sflag [#allocation4], 1
    %1696 = vsyncpa %s1695, 1

</llo_original>
